<compile_context>
chip_gen: v7x
topology: tpu7x:2x2x1
jax: 0.10.0
libtpu: 0.0.40
codegen_flags: <defaults>
</compile_context>

<pallas_src>
import math
import functools

import jax
import jax.numpy as jnp
from jax.experimental import pallas as pl
from jax.experimental.pallas import tpu as pltpu

L = 1.0


def _round_up(x, m):
    return ((x + m - 1) // m) * m


def _entity_projection_kernel(qf_ref, ql_ref, rf_ref, rl_ref,
                              w1f_ref, w1l_ref, b1_ref,
                              w2_ref, b2_ref,
                              w0_ref, b0_ref,
                              out_ref, h_ref):
    """One batch tile: 3-layer MLP + tanh/sigmoid split, all in VMEM."""
    cdt = w1f_ref.dtype  # MXU operand dtype (f32 or bf16); accumulate in f32

    # Fused q+r add and implicit concat: x @ w1 = xf @ w1_top + xl @ w1_bot.
    xf = (qf_ref[...] + rf_ref[...]).astype(cdt)
    xl = (ql_ref[...] + rl_ref[...]).astype(cdt)

    # layer1 + relu -> compute_dtype VMEM scratch
    h = (jnp.dot(xf, w1f_ref[...], preferred_element_type=jnp.float32)
         + jnp.dot(xl, w1l_ref[...], preferred_element_type=jnp.float32)
         + b1_ref[...])
    h_ref[...] = jnp.maximum(h, 0.0).astype(h_ref.dtype)

    # layer2 + relu -> scratch (reused)
    h2 = jnp.dot(h_ref[...], w2_ref[...],
                 preferred_element_type=jnp.float32) + b2_ref[...]
    h_ref[...] = jnp.maximum(h2, 0.0).astype(h_ref.dtype)

    # layer0 (projection back to token_dim = 2*dim)
    y = jnp.dot(h_ref[...], w0_ref[...],
                preferred_element_type=jnp.float32) + b0_ref[...]

    # Single-tanh epilogue (halves EUP work):
    #   feature = tanh(y) * L   on the left half
    #   logic   = sigmoid(2y) = (tanh(y)+1)/2 on the right half
    d = out_ref.shape[-1] // 2
    col = jax.lax.broadcasted_iota(jnp.int32, y.shape, dimension=1)
    t = jnp.tanh(y)
    out_ref[...] = jnp.where(col < d, t * L, 0.5 * (t + 1.0)).astype(out_ref.dtype)


@functools.partial(jax.jit, static_argnames=("block_b", "compute_dtype"))
def entity_projection_forward(q_feature, q_logic, r_feature, r_logic,
                              t_feature, t_logic, params, *,
                              block_b=256, compute_dtype=jnp.bfloat16):
    """Pallas forward for EntityProjection.

    q/r/t feature+logic: [B, dim] float32.  t_* are accepted but unused
    (matches the reference forward).  params: dict with w1,b1,w2,b2,w0,b0;
    weights stored (in, out), biases (1, out).
    """
    del t_feature, t_logic  # unused, as in the PyTorch forward

    B, dim = q_feature.shape
    token_dim = 2 * dim
    hidden = params["w1"].shape[1]

    # Batch tile: multiple of 8 sublanes; small batches get one exact tile.
    TB = min(block_b, _round_up(B, 8))
    B_pad = _round_up(B, TB)

    if B_pad != B:
        # Ragged last tile: pad (only path that copies the activations).
        pad_b = lambda x: jnp.pad(x, ((0, B_pad - B), (0, 0)))
        qf, ql, rf, rl = map(pad_b, (q_feature, q_logic, r_feature, r_logic))
    else:
        qf, ql, rf, rl = q_feature, q_logic, r_feature, r_logic

    # Split w1 row-wise so the concat never materializes; cast MXU operands.
    w1f = params["w1"][:dim].astype(compute_dtype)
    w1l = params["w1"][dim:].astype(compute_dtype)
    w2 = params["w2"].astype(compute_dtype)
    w0 = params["w0"].astype(compute_dtype)
    b1 = params["b1"].astype(jnp.float32)
    b2 = params["b2"].astype(jnp.float32)
    b0 = params["b0"].astype(jnp.float32)

    nb = B_pad // TB
    act_spec = pl.BlockSpec((TB, dim), lambda i: (i, 0))

    # Weights/biases: constant index_map (resident across all grid steps) and
    # single-buffered so they are not double-allocated in VMEM.
    def const(shape):
        return pl.BlockSpec(shape, lambda i: (0, 0),
                            pipeline_mode=pl.Buffered(1))

    itemsize = jnp.dtype(compute_dtype).itemsize
    weight_elems = token_dim * hidden + hidden * hidden + hidden * token_dim
    flops = 2 * B_pad * weight_elems
    transcendentals = B_pad * token_dim                       # single tanh
    bytes_accessed = (4 * B_pad * dim * 4                     # q/r tiles
                      + weight_elems * itemsize               # weights (once)
                      + (2 * hidden + token_dim) * 4          # biases
                      + B_pad * token_dim * 4)                # output

    # VMEM budget: single-buffered weights, double-buffered activation/output
    # tiles, one compute-dtype scratch; generous headroom, capped below the
    # smallest physical VMEM (v7x: 64 MiB per TC, one weight copy per TC).
    vmem_est = (weight_elems * itemsize
                + (2 * hidden + token_dim) * 4
                + 2 * 4 * TB * dim * 4
                + 2 * TB * token_dim * 4
                + TB * hidden * itemsize)
    vmem_limit = int(min(100 * 2**20, max(32 * 2**20, 3 * vmem_est)))

    y = pl.pallas_call(
        _entity_projection_kernel,
        out_shape=jax.ShapeDtypeStruct((B_pad, token_dim), jnp.float32),
        grid_spec=pltpu.PrefetchScalarGridSpec(
            num_scalar_prefetch=0,
            grid=(nb,),
            in_specs=[
                act_spec, act_spec, act_spec, act_spec,     # qf, ql, rf, rl
                const((dim, hidden)),                       # w1 (feature rows)
                const((dim, hidden)),                       # w1 (logic rows)
                const((1, hidden)),                         # b1
                const((hidden, hidden)),                    # w2
                const((1, hidden)),                         # b2
                const((hidden, token_dim)),                 # w0
                const((1, token_dim)),                      # b0
            ],
            out_specs=pl.BlockSpec((TB, token_dim), lambda i: (i, 0)),
            scratch_shapes=[pltpu.VMEM((TB, hidden), compute_dtype)],
        ),
        compiler_params=pltpu.CompilerParams(
            dimension_semantics=("parallel",),
            vmem_limit_bytes=vmem_limit),
        cost_estimate=pl.CostEstimate(flops=flops,
                                      transcendentals=transcendentals,
                                      bytes_accessed=bytes_accessed),
    )(qf, ql, rf, rl, w1f, w1l, b1, w2, b2, w0, b0)

    # feat/logic halves are not lane-aligned for general dim, so keep the one
    # lane-dense kernel output and slice here (fuses with consumers under jit).
    feat = y[:B, :dim]
    logic = y[:B, dim:]
    return feat, logic


def _xavier_uniform(key, fan_in, fan_out, dtype=jnp.float32):
    limit = math.sqrt(6.0 / (fan_in + fan_out))
    return jax.random.uniform(key, (fan_in, fan_out), dtype=dtype,
                              minval=-limit, maxval=limit)


def init_params(key, dim, hidden_dim):
    token_dim = dim * 2
    k1, k2, k0, kb1, kb2, kb0 = jax.random.split(key, 6)
    # weights stored as (in, out); biases kept 2-D (1, out), lane-aligned.
    return {
        "w1": _xavier_uniform(k1, token_dim, hidden_dim),
        "b1": jax.random.uniform(kb1, (1, hidden_dim), jnp.float32,
                                 minval=-1.0 / math.sqrt(token_dim),
                                 maxval=1.0 / math.sqrt(token_dim)),
        "w2": _xavier_uniform(k2, hidden_dim, hidden_dim),
        "b2": jax.random.uniform(kb2, (1, hidden_dim), jnp.float32,
                                 minval=-1.0 / math.sqrt(hidden_dim),
                                 maxval=1.0 / math.sqrt(hidden_dim)),
        "w0": _xavier_uniform(k0, hidden_dim, token_dim),
        "b0": jax.random.uniform(kb0, (1, token_dim), jnp.float32,
                                 minval=-1.0 / math.sqrt(hidden_dim),
                                 maxval=1.0 / math.sqrt(hidden_dim)),
    }


def _reference_forward(q_feature, q_logic, r_feature, r_logic, params):
    x = jnp.concatenate([q_feature + r_feature, q_logic + r_logic], axis=-1)
    h = jnp.maximum(x @ params["w1"] + params["b1"], 0.0)
    h = jnp.maximum(h @ params["w2"] + params["b2"], 0.0)
    y = h @ params["w0"] + params["b0"]
    d = q_feature.shape[-1]
    return jnp.tanh(y[:, :d]) * L, jax.nn.sigmoid(2.0 * y[:, d:])


if __name__ == "__main__":
    B = 200           # multiple of 8 -> fits one exact 200-row tile, no pad
    dim = 64          # token_dim = 128 (lane-dense combined output)
    hidden_dim = 128  # reference default is 800; scaled down, same structure

    key = jax.random.PRNGKey(0)
    kp, kq1, kq2, kr1, kr2, kt1, kt2 = jax.random.split(key, 7)

    params = init_params(kp, dim, hidden_dim)

    q_feature = jax.random.normal(kq1, (B, dim), jnp.float32)
    q_logic = jax.nn.sigmoid(jax.random.normal(kq2, (B, dim), jnp.float32))
    r_feature = jax.random.normal(kr1, (B, dim), jnp.float32)
    r_logic = jax.nn.sigmoid(jax.random.normal(kr2, (B, dim), jnp.float32))
    t_feature = jax.random.normal(kt1, (B, dim), jnp.float32)
    t_logic = jax.nn.sigmoid(jax.random.normal(kt2, (B, dim), jnp.float32))

    ref_feat, ref_logic = _reference_forward(
        q_feature, q_logic, r_feature, r_logic, params)

    # f32 MXU path (near-exact vs reference; single-tanh identity is exact).
    feat, logic = entity_projection_forward(
        q_feature, q_logic, r_feature, r_logic, t_feature, t_logic, params,
        block_b=256, compute_dtype=jnp.float32)
    jax.block_until_ready((feat, logic))
    assert feat.shape == (B, dim) and logic.shape == (B, dim)
    assert jnp.allclose(feat, ref_feat, atol=2e-5, rtol=2e-5)
    assert jnp.allclose(logic, ref_logic, atol=2e-5, rtol=2e-5)

    # Default path: bf16 MXU operands + bf16 intermediate scratch, f32 accum.
    feat_bf, logic_bf = entity_projection_forward(
        q_feature, q_logic, r_feature, r_logic, t_feature, t_logic, params)
    jax.block_until_ready((feat_bf, logic_bf))
    assert jnp.allclose(feat_bf, ref_feat, atol=5e-2, rtol=5e-2)
    assert jnp.allclose(logic_bf, ref_logic, atol=5e-2, rtol=5e-2)

    # TODO(synk): nn.Dropout (p=0.1) is inactive in eval-mode forward; not implemented.
    print("KERNEL_OK")
</pallas_src>

<mosaic_0001>
module attributes {stable_mosaic.version = 11 : i64} {
  func.func @_entity_projection_kernel(%arg0: i32, %arg1: memref<200x64xf32, #tpu.memory_space<vmem>>, %arg2: memref<200x64xf32, #tpu.memory_space<vmem>>, %arg3: memref<200x64xf32, #tpu.memory_space<vmem>>, %arg4: memref<200x64xf32, #tpu.memory_space<vmem>>, %arg5: memref<64x128xf32, #tpu.memory_space<vmem>>, %arg6: memref<64x128xf32, #tpu.memory_space<vmem>>, %arg7: memref<1x128xf32, #tpu.memory_space<vmem>>, %arg8: memref<128x128xf32, #tpu.memory_space<vmem>>, %arg9: memref<1x128xf32, #tpu.memory_space<vmem>>, %arg10: memref<128x128xf32, #tpu.memory_space<vmem>>, %arg11: memref<1x128xf32, #tpu.memory_space<vmem>>, %arg12: memref<200x128xf32, #tpu.memory_space<vmem>>, %arg13: memref<200x128xf32, #tpu.memory_space<vmem>>) attributes {dimension_semantics = [#tpu.dimension_semantics<parallel>], iteration_bounds = array<i64: 1>, scalar_prefetch = 0 : i64, scratch_operands = 1 : i64, tpu.core_type = #tpu.core_type<tc>, window_params = [{transform_indices = @transform_0, window_bounds = array<i64: 200, 64>}, {transform_indices = @transform_1, window_bounds = array<i64: 200, 64>}, {transform_indices = @transform_2, window_bounds = array<i64: 200, 64>}, {transform_indices = @transform_3, window_bounds = array<i64: 200, 64>}, {pipeline_mode = #tpu.pipeline_mode<synchronous>, transform_indices = @transform_4, window_bounds = array<i64: 64, 128>}, {pipeline_mode = #tpu.pipeline_mode<synchronous>, transform_indices = @transform_5, window_bounds = array<i64: 64, 128>}, {pipeline_mode = #tpu.pipeline_mode<synchronous>, transform_indices = @transform_6, window_bounds = array<i64: 1, 128>}, {pipeline_mode = #tpu.pipeline_mode<synchronous>, transform_indices = @transform_7, window_bounds = array<i64: 128, 128>}, {pipeline_mode = #tpu.pipeline_mode<synchronous>, transform_indices = @transform_8, window_bounds = array<i64: 1, 128>}, {pipeline_mode = #tpu.pipeline_mode<synchronous>, transform_indices = @transform_9, window_bounds = array<i64: 128, 128>}, {pipeline_mode = #tpu.pipeline_mode<synchronous>, transform_indices = @transform_10, window_bounds = array<i64: 1, 128>}, {transform_indices = @transform_11, window_bounds = array<i64: 200, 128>}]} {
    %c0 = arith.constant 0 : index
    %c0_0 = arith.constant 0 : index
    %0 = vector.load %arg1[%c0, %c0_0] : memref<200x64xf32, #tpu.memory_space<vmem>>, vector<200x64xf32>
    %c0_1 = arith.constant 0 : index
    %c0_2 = arith.constant 0 : index
    %1 = vector.load %arg3[%c0_1, %c0_2] : memref<200x64xf32, #tpu.memory_space<vmem>>, vector<200x64xf32>
    %2 = arith.addf %0, %1 : vector<200x64xf32>
    %c0_3 = arith.constant 0 : index
    %c0_4 = arith.constant 0 : index
    %3 = vector.load %arg2[%c0_3, %c0_4] : memref<200x64xf32, #tpu.memory_space<vmem>>, vector<200x64xf32>
    %c0_5 = arith.constant 0 : index
    %c0_6 = arith.constant 0 : index
    %4 = vector.load %arg4[%c0_5, %c0_6] : memref<200x64xf32, #tpu.memory_space<vmem>>, vector<200x64xf32>
    %5 = arith.addf %3, %4 : vector<200x64xf32>
    %c0_7 = arith.constant 0 : index
    %c0_8 = arith.constant 0 : index
    %6 = vector.load %arg5[%c0_7, %c0_8] : memref<64x128xf32, #tpu.memory_space<vmem>>, vector<64x128xf32>
    %cst = arith.constant dense<0.000000e+00> : vector<200x128xf32>
    %7 = tpu.matmul %2, %6, %cst {dimension_numbers = #tpu.dot_dimension_numbers<[1], [0], [0], [1], [0, 0, 1, 1], [], []>} : vector<200x64xf32>, vector<64x128xf32>, vector<200x128xf32> -> vector<200x128xf32>
    %c0_9 = arith.constant 0 : index
    %c0_10 = arith.constant 0 : index
    %8 = vector.load %arg6[%c0_9, %c0_10] : memref<64x128xf32, #tpu.memory_space<vmem>>, vector<64x128xf32>
    %cst_11 = arith.constant dense<0.000000e+00> : vector<200x128xf32>
    %9 = tpu.matmul %5, %8, %cst_11 {dimension_numbers = #tpu.dot_dimension_numbers<[1], [0], [0], [1], [0, 0, 1, 1], [], []>} : vector<200x64xf32>, vector<64x128xf32>, vector<200x128xf32> -> vector<200x128xf32>
    %10 = arith.addf %7, %9 : vector<200x128xf32>
    %c0_12 = arith.constant 0 : index
    %c0_13 = arith.constant 0 : index
    %11 = vector.load %arg7[%c0_12, %c0_13] : memref<1x128xf32, #tpu.memory_space<vmem>>, vector<1x128xf32>
    %12 = vector.broadcast %11 : vector<1x128xf32> to vector<200x128xf32>
    %13 = arith.addf %10, %12 : vector<200x128xf32>
    %cst_14 = arith.constant 0.000000e+00 : f32
    %14 = vector.broadcast %cst_14 : f32 to vector<200x128xf32>
    %15 = arith.maximumf %13, %14 : vector<200x128xf32>
    %c0_15 = arith.constant 0 : index
    %c0_16 = arith.constant 0 : index
    %16 = vector.load %arg13[%c0_15, %c0_16] : memref<200x128xf32, #tpu.memory_space<vmem>>, vector<200x128xf32>
    tpu.vector_store %arg13[%c0_15, %c0_16], %15 {strides = array<i32>} : memref<200x128xf32, #tpu.memory_space<vmem>>, vector<200x128xf32>,
    %c0_17 = arith.constant 0 : index
    %c0_18 = arith.constant 0 : index
    %17 = vector.load %arg13[%c0_17, %c0_18] : memref<200x128xf32, #tpu.memory_space<vmem>>, vector<200x128xf32>
    %c0_19 = arith.constant 0 : index
    %c0_20 = arith.constant 0 : index
    %18 = vector.load %arg8[%c0_19, %c0_20] : memref<128x128xf32, #tpu.memory_space<vmem>>, vector<128x128xf32>
    %cst_21 = arith.constant dense<0.000000e+00> : vector<200x128xf32>
    %19 = tpu.matmul %17, %18, %cst_21 {dimension_numbers = #tpu.dot_dimension_numbers<[1], [0], [0], [1], [0, 0, 1, 1], [], []>} : vector<200x128xf32>, vector<128x128xf32>, vector<200x128xf32> -> vector<200x128xf32>
    %c0_22 = arith.constant 0 : index
    %c0_23 = arith.constant 0 : index
    %20 = vector.load %arg9[%c0_22, %c0_23] : memref<1x128xf32, #tpu.memory_space<vmem>>, vector<1x128xf32>
    %21 = vector.broadcast %20 : vector<1x128xf32> to vector<200x128xf32>
    %22 = arith.addf %19, %21 : vector<200x128xf32>
    %cst_24 = arith.constant 0.000000e+00 : f32
    %23 = vector.broadcast %cst_24 : f32 to vector<200x128xf32>
    %24 = arith.maximumf %22, %23 : vector<200x128xf32>
    %c0_25 = arith.constant 0 : index
    %c0_26 = arith.constant 0 : index
    %25 = vector.load %arg13[%c0_25, %c0_26] : memref<200x128xf32, #tpu.memory_space<vmem>>, vector<200x128xf32>
    tpu.vector_store %arg13[%c0_25, %c0_26], %24 {strides = array<i32>} : memref<200x128xf32, #tpu.memory_space<vmem>>, vector<200x128xf32>,
    %c0_27 = arith.constant 0 : index
    %c0_28 = arith.constant 0 : index
    %26 = vector.load %arg13[%c0_27, %c0_28] : memref<200x128xf32, #tpu.memory_space<vmem>>, vector<200x128xf32>
    %c0_29 = arith.constant 0 : index
    %c0_30 = arith.constant 0 : index
    %27 = vector.load %arg10[%c0_29, %c0_30] : memref<128x128xf32, #tpu.memory_space<vmem>>, vector<128x128xf32>
    %cst_31 = arith.constant dense<0.000000e+00> : vector<200x128xf32>
    %28 = tpu.matmul %26, %27, %cst_31 {dimension_numbers = #tpu.dot_dimension_numbers<[1], [0], [0], [1], [0, 0, 1, 1], [], []>} : vector<200x128xf32>, vector<128x128xf32>, vector<200x128xf32> -> vector<200x128xf32>
    %c0_32 = arith.constant 0 : index
    %c0_33 = arith.constant 0 : index
    %29 = vector.load %arg11[%c0_32, %c0_33] : memref<1x128xf32, #tpu.memory_space<vmem>>, vector<1x128xf32>
    %30 = vector.broadcast %29 : vector<1x128xf32> to vector<200x128xf32>
    %31 = arith.addf %28, %30 : vector<200x128xf32>
    %32 = tpu.iota {dimensions = array<i32: 1>} : vector<200x128xi32>
    %33 = math.tanh %31 : vector<200x128xf32>
    %c64_i32 = arith.constant 64 : i32
    %34 = vector.broadcast %c64_i32 : i32 to vector<200x128xi32>
    %35 = arith.cmpi slt, %32, %34 : vector<200x128xi32>
    %cst_34 = arith.constant 1.000000e+00 : f32
    %36 = vector.broadcast %cst_34 : f32 to vector<200x128xf32>
    %37 = arith.mulf %33, %36 : vector<200x128xf32>
    %cst_35 = arith.constant 1.000000e+00 : f32
    %38 = vector.broadcast %cst_35 : f32 to vector<200x128xf32>
    %39 = arith.addf %33, %38 : vector<200x128xf32>
    %cst_36 = arith.constant 5.000000e-01 : f32
    %40 = vector.broadcast %cst_36 : f32 to vector<200x128xf32>
    %41 = arith.mulf %40, %39 : vector<200x128xf32>
    %42 = arith.select %35, %37, %41 : vector<200x128xi1>, vector<200x128xf32>
    %c0_37 = arith.constant 0 : index
    %c0_38 = arith.constant 0 : index
    %43 = vector.load %arg12[%c0_37, %c0_38] : memref<200x128xf32, #tpu.memory_space<vmem>>, vector<200x128xf32>
    tpu.vector_store %arg12[%c0_37, %c0_38], %42 {strides = array<i32>} : memref<200x128xf32, #tpu.memory_space<vmem>>, vector<200x128xf32>,
    return
  }
  func.func @transform_0(%arg0: i32) -> (i32, i32) {
    %c0_i32 = arith.constant 0 : i32
    %c0_i32_0 = arith.constant 0 : i32
    return %arg0, %c0_i32 : i32, i32
  }
  func.func @transform_1(%arg0: i32) -> (i32, i32) {
    %c0_i32 = arith.constant 0 : i32
    %c0_i32_0 = arith.constant 0 : i32
    return %arg0, %c0_i32 : i32, i32
  }
  func.func @transform_2(%arg0: i32) -> (i32, i32) {
    %c0_i32 = arith.constant 0 : i32
    %c0_i32_0 = arith.constant 0 : i32
    return %arg0, %c0_i32 : i32, i32
  }
  func.func @transform_3(%arg0: i32) -> (i32, i32) {
    %c0_i32 = arith.constant 0 : i32
    %c0_i32_0 = arith.constant 0 : i32
    return %arg0, %c0_i32 : i32, i32
  }
  func.func @transform_4(%arg0: i32) -> (i32, i32) {
    %c0_i32 = arith.constant 0 : i32
    %c0_i32_0 = arith.constant 0 : i32
    %c0_i32_1 = arith.constant 0 : i32
    return %c0_i32, %c0_i32_0 : i32, i32
  }
  func.func @transform_5(%arg0: i32) -> (i32, i32) {
    %c0_i32 = arith.constant 0 : i32
    %c0_i32_0 = arith.constant 0 : i32
    %c0_i32_1 = arith.constant 0 : i32
    return %c0_i32, %c0_i32_0 : i32, i32
  }
  func.func @transform_6(%arg0: i32) -> (i32, i32) {
    %c0_i32 = arith.constant 0 : i32
    %c0_i32_0 = arith.constant 0 : i32
    %c0_i32_1 = arith.constant 0 : i32
    return %c0_i32, %c0_i32_0 : i32, i32
  }
  func.func @transform_7(%arg0: i32) -> (i32, i32) {
    %c0_i32 = arith.constant 0 : i32
    %c0_i32_0 = arith.constant 0 : i32
    %c0_i32_1 = arith.constant 0 : i32
    return %c0_i32, %c0_i32_0 : i32, i32
  }
  func.func @transform_8(%arg0: i32) -> (i32, i32) {
    %c0_i32 = arith.constant 0 : i32
    %c0_i32_0 = arith.constant 0 : i32
    %c0_i32_1 = arith.constant 0 : i32
    return %c0_i32, %c0_i32_0 : i32, i32
  }
  func.func @transform_9(%arg0: i32) -> (i32, i32) {
    %c0_i32 = arith.constant 0 : i32
    %c0_i32_0 = arith.constant 0 : i32
    %c0_i32_1 = arith.constant 0 : i32
    return %c0_i32, %c0_i32_0 : i32, i32
  }
  func.func @transform_10(%arg0: i32) -> (i32, i32) {
    %c0_i32 = arith.constant 0 : i32
    %c0_i32_0 = arith.constant 0 : i32
    %c0_i32_1 = arith.constant 0 : i32
    return %c0_i32, %c0_i32_0 : i32, i32
  }
  func.func @transform_11(%arg0: i32) -> (i32, i32) {
    %c0_i32 = arith.constant 0 : i32
    %c0_i32_0 = arith.constant 0 : i32
    return %arg0, %c0_i32 : i32, i32
  }
}

</mosaic_0001>

<llo_original>
// kernel: entity_projection_forward.1
$region0: #{entity_projection_forward.1}
  #allocation0 [shape = 'u32[]', space=smem, size = 0x4, offset = 0x4, fixed_abs, tag = 'smem constant byte address 0x4 - core index']
  #allocation1 [shape = 'u32[144,128]{1,0:T(1,128)}', space=vmem, size = 0x12000, scoped, tag = 'internal scratch']
  #allocation2 [shape = 'f32[200,128]{1,0:T(8,128)}', space=vmem, size = 0x19000, scoped, tag = 'scratch operand']
  %s0 = inlined_call_operand.vmem [shape: f32[200,64], index: 0, kind: input, shape index: {}]
  %s1 = inlined_call_operand.vmem [shape: f32[200,64], index: 1, kind: input, shape index: {}]
  %s2 = inlined_call_operand.vmem [shape: f32[200,64], index: 2, kind: input, shape index: {}]
  %s3 = inlined_call_operand.vmem [shape: f32[200,64], index: 3, kind: input, shape index: {}]
  %s4 = inlined_call_operand.vmem [shape: f32[64,128], index: 4, kind: input, shape index: {}]
  %s5 = inlined_call_operand.vmem [shape: f32[64,128], index: 5, kind: input, shape index: {}]
  %s6 = inlined_call_operand.vmem [shape: f32[1,128], index: 6, kind: input, shape index: {}]
  %s7 = inlined_call_operand.vmem [shape: f32[128,128], index: 7, kind: input, shape index: {}]
  %s8 = inlined_call_operand.vmem [shape: f32[1,128], index: 8, kind: input, shape index: {}]
  %s9 = inlined_call_operand.vmem [shape: f32[128,128], index: 9, kind: input, shape index: {}]
  %s10 = inlined_call_operand.vmem [shape: f32[1,128], index: 10, kind: input, shape index: {}]
  %s11 = inlined_call_operand.vmem [shape: f32[200,128], index: 11, kind: output, shape index: {}]
  %s12 = sld [smem:[#allocation0]]
  $region54: #{entity_projection_forward.1} parent=0
    _
  %s14 = ssub.s32 1, %s12
  %s15 = scalar_select 0, %s14, %s12
  // Predicated region
  $region2: #{entity_projection_forward.1} parent=0 // pred_check
    _
  $region3: #{entity_projection_forward.1} parent=0 // pred_check_branch
    %17 = sbr.rel (0) target = $region5
  $region4: #{entity_projection_forward.1} parent=0 // pred_region
    _
  $region5: #{entity_projection_forward.1} parent=0 // pred_fallthru
    _
  // Predicated region
  $region6: #{entity_projection_forward.1} parent=0 // pred_check
    _
  $region7: #{entity_projection_forward.1} parent=0 // pred_check_branch
    %19 = sbr.rel (0) target = $region9
  $region8: #{entity_projection_forward.1} parent=0 // pred_region
    _
  $region9: #{entity_projection_forward.1} parent=0 // pred_fallthru
    _
  // Predicated region
  $region10: #{entity_projection_forward.1} parent=0 // pred_check
    _
  $region11: #{entity_projection_forward.1} parent=0 // pred_check_branch
    %21 = sbr.rel (0) target = $region13
  $region12: #{entity_projection_forward.1} parent=0 // pred_region
    _
  $region13: #{entity_projection_forward.1} parent=0 // pred_fallthru
    _
  // Predicated region
  $region14: #{entity_projection_forward.1} parent=0 // pred_check
    _
  $region15: #{entity_projection_forward.1} parent=0 // pred_check_branch
    %23 = sbr.rel (0) target = $region17
  $region16: #{entity_projection_forward.1} parent=0 // pred_region
    _
  $region17: #{entity_projection_forward.1} parent=0 // pred_fallthru
    _
  // Predicated region
  $region18: #{entity_projection_forward.1} parent=0 // pred_check
    _
  $region19: #{entity_projection_forward.1} parent=0 // pred_check_branch
    %25 = sbr.rel (0) target = $region21
  $region20: #{entity_projection_forward.1} parent=0 // pred_region
    _
  $region21: #{entity_projection_forward.1} parent=0 // pred_fallthru
    _
  // Predicated region
  $region22: #{entity_projection_forward.1} parent=0 // pred_check
    _
  $region23: #{entity_projection_forward.1} parent=0 // pred_check_branch
    %27 = sbr.rel (0) target = $region25
  $region24: #{entity_projection_forward.1} parent=0 // pred_region
    _
  $region25: #{entity_projection_forward.1} parent=0 // pred_fallthru
    _
  // Predicated region
  $region26: #{entity_projection_forward.1} parent=0 // pred_check
    _
  $region27: #{entity_projection_forward.1} parent=0 // pred_check_branch
    %29 = sbr.rel (0) target = $region29
  $region28: #{entity_projection_forward.1} parent=0 // pred_region
    _
  $region29: #{entity_projection_forward.1} parent=0 // pred_fallthru
    _
  // Predicated region
  $region30: #{entity_projection_forward.1} parent=0 // pred_check
    _
  $region31: #{entity_projection_forward.1} parent=0 // pred_check_branch
    %31 = sbr.rel (0) target = $region33
  $region32: #{entity_projection_forward.1} parent=0 // pred_region
    _
  $region33: #{entity_projection_forward.1} parent=0 // pred_fallthru
    _
  // Predicated region
  $region34: #{entity_projection_forward.1} parent=0 // pred_check
    _
  $region35: #{entity_projection_forward.1} parent=0 // pred_check_branch
    %33 = sbr.rel (0) target = $region37
  $region36: #{entity_projection_forward.1} parent=0 // pred_region
    _
  $region37: #{entity_projection_forward.1} parent=0 // pred_fallthru
    _
  // Predicated region
  $region38: #{entity_projection_forward.1} parent=0 // pred_check
    _
  $region39: #{entity_projection_forward.1} parent=0 // pred_check_branch
    %35 = sbr.rel (0) target = $region41
  $region40: #{entity_projection_forward.1} parent=0 // pred_region
    _
  $region41: #{entity_projection_forward.1} parent=0 // pred_fallthru
    _
  // Predicated region
  $region42: #{entity_projection_forward.1} parent=0 // pred_check
    _
  $region43: #{entity_projection_forward.1} parent=0 // pred_check_branch
    %37 = sbr.rel (0) target = $region45
  $region44: #{entity_projection_forward.1} parent=0 // pred_region
    _
  $region45: #{entity_projection_forward.1} parent=0 // pred_fallthru
    _
  %v38 = vld [vmem:[%s0] sm:$0xff]
  %v39 = vld [vmem:[%s0 + $0x8] sm:$0xff]
  %v40 = vld [vmem:[%s0 + $0x10] sm:$0xff]
  %v41 = vld [vmem:[%s0 + $0x18] sm:$0xff]
  %v42 = vld [vmem:[%s0 + $0x20] sm:$0xff]
  %v43 = vld [vmem:[%s0 + $0x28] sm:$0xff]
  %v44 = vld [vmem:[%s0 + $0x30] sm:$0xff]
  %v45 = vld [vmem:[%s0 + $0x38] sm:$0xff]
  %v46 = vld [vmem:[%s0 + $0x40] sm:$0xff]
  %v47 = vld [vmem:[%s0 + $0x48] sm:$0xff]
  %v48 = vld [vmem:[%s0 + $0x50] sm:$0xff]
  %v49 = vld [vmem:[%s0 + $0x58] sm:$0xff]
  %v50 = vld [vmem:[%s0 + $0x60] sm:$0xff]
  %v51 = vld [vmem:[%s0 + $0x68] sm:$0xff]
  %v52 = vld [vmem:[%s0 + $0x70] sm:$0xff]
  %v53 = vld [vmem:[%s0 + $0x78] sm:$0xff]
  %v54 = vld [vmem:[%s0 + $0x80] sm:$0xff]
  %v55 = vld [vmem:[%s0 + $0x88] sm:$0xff]
  %v56 = vld [vmem:[%s0 + $0x90] sm:$0xff]
  %v57 = vld [vmem:[%s0 + $0x98] sm:$0xff]
  %v58 = vld [vmem:[%s0 + $0xa0] sm:$0xff]
  %v59 = vld [vmem:[%s0 + $0xa8] sm:$0xff]
  %v60 = vld [vmem:[%s0 + $0xb0] sm:$0xff]
  %v61 = vld [vmem:[%s0 + $0xb8] sm:$0xff]
  %v62 = vld [vmem:[%s0 + $0xc0] sm:$0xff]
  %v63 = vld [vmem:[%s2] sm:$0xff]
  %v64 = vld [vmem:[%s2 + $0x8] sm:$0xff]
  %v65 = vld [vmem:[%s2 + $0x10] sm:$0xff]
  %v66 = vld [vmem:[%s2 + $0x18] sm:$0xff]
  %v67 = vld [vmem:[%s2 + $0x20] sm:$0xff]
  %v68 = vld [vmem:[%s2 + $0x28] sm:$0xff]
  %v69 = vld [vmem:[%s2 + $0x30] sm:$0xff]
  %v70 = vld [vmem:[%s2 + $0x38] sm:$0xff]
  %v71 = vld [vmem:[%s2 + $0x40] sm:$0xff]
  %v72 = vld [vmem:[%s2 + $0x48] sm:$0xff]
  %v73 = vld [vmem:[%s2 + $0x50] sm:$0xff]
  %v74 = vld [vmem:[%s2 + $0x58] sm:$0xff]
  %v75 = vld [vmem:[%s2 + $0x60] sm:$0xff]
  %v76 = vld [vmem:[%s2 + $0x68] sm:$0xff]
  %v77 = vld [vmem:[%s2 + $0x70] sm:$0xff]
  %v78 = vld [vmem:[%s2 + $0x78] sm:$0xff]
  %v79 = vld [vmem:[%s2 + $0x80] sm:$0xff]
  %v80 = vld [vmem:[%s2 + $0x88] sm:$0xff]
  %v81 = vld [vmem:[%s2 + $0x90] sm:$0xff]
  %v82 = vld [vmem:[%s2 + $0x98] sm:$0xff]
  %v83 = vld [vmem:[%s2 + $0xa0] sm:$0xff]
  %v84 = vld [vmem:[%s2 + $0xa8] sm:$0xff]
  %v85 = vld [vmem:[%s2 + $0xb0] sm:$0xff]
  %v86 = vld [vmem:[%s2 + $0xb8] sm:$0xff]
  %v87 = vld [vmem:[%s2 + $0xc0] sm:$0xff]
  %v88 = vadd.f32 %v38, %v63
  %v89 = vadd.f32 %v39, %v64
  %v90 = vadd.f32 %v40, %v65
  %v91 = vadd.f32 %v41, %v66
  %v92 = vadd.f32 %v42, %v67
  %v93 = vadd.f32 %v43, %v68
  %v94 = vadd.f32 %v44, %v69
  %v95 = vadd.f32 %v45, %v70
  %v96 = vadd.f32 %v46, %v71
  %v97 = vadd.f32 %v47, %v72
  %v98 = vadd.f32 %v48, %v73
  %v99 = vadd.f32 %v49, %v74
  %v100 = vadd.f32 %v50, %v75
  %v101 = vadd.f32 %v51, %v76
  %v102 = vadd.f32 %v52, %v77
  %v103 = vadd.f32 %v53, %v78
  %v104 = vadd.f32 %v54, %v79
  %v105 = vadd.f32 %v55, %v80
  %v106 = vadd.f32 %v56, %v81
  %v107 = vadd.f32 %v57, %v82
  %v108 = vadd.f32 %v58, %v83
  %v109 = vadd.f32 %v59, %v84
  %v110 = vadd.f32 %v60, %v85
  %v111 = vadd.f32 %v61, %v86
  %v112 = vadd.f32 %v62, %v87
  %v113 = vld [vmem:[%s1] sm:$0xff]
  %v114 = vld [vmem:[%s1 + $0x8] sm:$0xff]
  %v115 = vld [vmem:[%s1 + $0x10] sm:$0xff]
  %v116 = vld [vmem:[%s1 + $0x18] sm:$0xff]
  %v117 = vld [vmem:[%s1 + $0x20] sm:$0xff]
  %v118 = vld [vmem:[%s1 + $0x28] sm:$0xff]
  %v119 = vld [vmem:[%s1 + $0x30] sm:$0xff]
  %v120 = vld [vmem:[%s1 + $0x38] sm:$0xff]
  %v121 = vld [vmem:[%s1 + $0x40] sm:$0xff]
  %v122 = vld [vmem:[%s1 + $0x48] sm:$0xff]
  %v123 = vld [vmem:[%s1 + $0x50] sm:$0xff]
  %v124 = vld [vmem:[%s1 + $0x58] sm:$0xff]
  %v125 = vld [vmem:[%s1 + $0x60] sm:$0xff]
  %v126 = vld [vmem:[%s1 + $0x68] sm:$0xff]
  %v127 = vld [vmem:[%s1 + $0x70] sm:$0xff]
  %v128 = vld [vmem:[%s1 + $0x78] sm:$0xff]
  %v129 = vld [vmem:[%s1 + $0x80] sm:$0xff]
  %v130 = vld [vmem:[%s1 + $0x88] sm:$0xff]
  %v131 = vld [vmem:[%s1 + $0x90] sm:$0xff]
  %v132 = vld [vmem:[%s1 + $0x98] sm:$0xff]
  %v133 = vld [vmem:[%s1 + $0xa0] sm:$0xff]
  %v134 = vld [vmem:[%s1 + $0xa8] sm:$0xff]
  %v135 = vld [vmem:[%s1 + $0xb0] sm:$0xff]
  %v136 = vld [vmem:[%s1 + $0xb8] sm:$0xff]
  %v137 = vld [vmem:[%s1 + $0xc0] sm:$0xff]
  %v138 = vld [vmem:[%s3] sm:$0xff]
  %v139 = vld [vmem:[%s3 + $0x8] sm:$0xff]
  %v140 = vld [vmem:[%s3 + $0x10] sm:$0xff]
  %v141 = vld [vmem:[%s3 + $0x18] sm:$0xff]
  %v142 = vld [vmem:[%s3 + $0x20] sm:$0xff]
  %v143 = vld [vmem:[%s3 + $0x28] sm:$0xff]
  %v144 = vld [vmem:[%s3 + $0x30] sm:$0xff]
  %v145 = vld [vmem:[%s3 + $0x38] sm:$0xff]
  %v146 = vld [vmem:[%s3 + $0x40] sm:$0xff]
  %v147 = vld [vmem:[%s3 + $0x48] sm:$0xff]
  %v148 = vld [vmem:[%s3 + $0x50] sm:$0xff]
  %v149 = vld [vmem:[%s3 + $0x58] sm:$0xff]
  %v150 = vld [vmem:[%s3 + $0x60] sm:$0xff]
  %v151 = vld [vmem:[%s3 + $0x68] sm:$0xff]
  %v152 = vld [vmem:[%s3 + $0x70] sm:$0xff]
  %v153 = vld [vmem:[%s3 + $0x78] sm:$0xff]
  %v154 = vld [vmem:[%s3 + $0x80] sm:$0xff]
  %v155 = vld [vmem:[%s3 + $0x88] sm:$0xff]
  %v156 = vld [vmem:[%s3 + $0x90] sm:$0xff]
  %v157 = vld [vmem:[%s3 + $0x98] sm:$0xff]
  %v158 = vld [vmem:[%s3 + $0xa0] sm:$0xff]
  %v159 = vld [vmem:[%s3 + $0xa8] sm:$0xff]
  %v160 = vld [vmem:[%s3 + $0xb0] sm:$0xff]
  %v161 = vld [vmem:[%s3 + $0xb8] sm:$0xff]
  %v162 = vld [vmem:[%s3 + $0xc0] sm:$0xff]
  %v163 = vadd.f32 %v113, %v138
  %v164 = vadd.f32 %v114, %v139
  %v165 = vadd.f32 %v115, %v140
  %v166 = vadd.f32 %v116, %v141
  %v167 = vadd.f32 %v117, %v142
  %v168 = vadd.f32 %v118, %v143
  %v169 = vadd.f32 %v119, %v144
  %v170 = vadd.f32 %v120, %v145
  %v171 = vadd.f32 %v121, %v146
  %v172 = vadd.f32 %v122, %v147
  %v173 = vadd.f32 %v123, %v148
  %v174 = vadd.f32 %v124, %v149
  %v175 = vadd.f32 %v125, %v150
  %v176 = vadd.f32 %v126, %v151
  %v177 = vadd.f32 %v127, %v152
  %v178 = vadd.f32 %v128, %v153
  %v179 = vadd.f32 %v129, %v154
  %v180 = vadd.f32 %v130, %v155
  %v181 = vadd.f32 %v131, %v156
  %v182 = vadd.f32 %v132, %v157
  %v183 = vadd.f32 %v133, %v158
  %v184 = vadd.f32 %v134, %v159
  %v185 = vadd.f32 %v135, %v160
  %v186 = vadd.f32 %v136, %v161
  %v187 = vadd.f32 %v137, %v162
  %v188 = vld [vmem:[%s4] sm:$0xff]
  %v189 = vld [vmem:[%s4 + $0x8] sm:$0xff]
  %v190 = vld [vmem:[%s4 + $0x10] sm:$0xff]
  %v191 = vld [vmem:[%s4 + $0x18] sm:$0xff]
  %v192 = vld [vmem:[%s4 + $0x20] sm:$0xff]
  %v193 = vld [vmem:[%s4 + $0x28] sm:$0xff]
  %v194 = vld [vmem:[%s4 + $0x30] sm:$0xff]
  %v195 = vld [vmem:[%s4 + $0x38] sm:$0xff]
  %v196 = vld [vmem:[%s5] sm:$0xff]
  %v197 = vld [vmem:[%s5 + $0x8] sm:$0xff]
  %v198 = vld [vmem:[%s5 + $0x10] sm:$0xff]
  %v199 = vld [vmem:[%s5 + $0x18] sm:$0xff]
  %v200 = vld [vmem:[%s5 + $0x20] sm:$0xff]
  %v201 = vld [vmem:[%s5 + $0x28] sm:$0xff]
  %v202 = vld [vmem:[%s5 + $0x30] sm:$0xff]
  %v203 = vld [vmem:[%s5 + $0x38] sm:$0xff]
  %vm204 = vcmask 523264
  %v206 = vsel %vm204, %v163, 0
  %v209 = vsel %vm204, %v164, 0
  %v212 = vsel %vm204, %v165, 0
  %v215 = vsel %vm204, %v166, 0
  %v218 = vsel %vm204, %v167, 0
  %v221 = vsel %vm204, %v168, 0
  %v224 = vsel %vm204, %v169, 0
  %v227 = vsel %vm204, %v170, 0
  %v230 = vsel %vm204, %v171, 0
  %v233 = vsel %vm204, %v172, 0
  %v236 = vsel %vm204, %v173, 0
  %v239 = vsel %vm204, %v174, 0
  %v242 = vsel %vm204, %v175, 0
  %v245 = vsel %vm204, %v176, 0
  %v248 = vsel %vm204, %v177, 0
  %v251 = vsel %vm204, %v178, 0
  %v254 = vsel %vm204, %v179, 0
  %v257 = vsel %vm204, %v180, 0
  %v260 = vsel %vm204, %v181, 0
  %v263 = vsel %vm204, %v182, 0
  %v266 = vsel %vm204, %v183, 0
  %v269 = vsel %vm204, %v184, 0
  %v272 = vsel %vm204, %v185, 0
  %v275 = vsel %vm204, %v186, 0
  %v278 = vsel %vm204, %v187, 0
  %280 = vmatprep.subr.mxu0 0.0
  %281 = vmatpush1.msra.mxu0 %v196
  %282 = vmatprep.subr.mxu0 0.0
  %283 = vmatpush1.msra.mxu0 %v197
  %284 = vmatprep.subr.mxu0 0.0
  %285 = vmatpush1.msra.mxu0 %v198
  %286 = vmatprep.subr.mxu0 0.0
  %287 = vmatpush1.msra.mxu0 %v199
  %288 = vmatprep.subr.mxu0 0.0
  %289 = vmatpush1.msra.mxu0 %v200
  %290 = vmatprep.subr.mxu0 0.0
  %291 = vmatpush1.msra.mxu0 %v201
  %292 = vmatprep.subr.mxu0 0.0
  %293 = vmatpush1.msra.mxu0 %v202
  %294 = vmatprep.subr.mxu0 0.0
  %295 = vmatpush1.msra.mxu0 %v203
  %296 = vmatprep.subr.mxu0 0.0
  %297 = vmatpush1.msra.mxu0 0.0
  %298 = vmatprep.subr.mxu0 0.0
  %299 = vmatpush1.msra.mxu0 0.0
  %300 = vmatprep.subr.mxu0 0.0
  %301 = vmatpush1.msra.mxu0 0.0
  %302 = vmatprep.subr.mxu0 0.0
  %303 = vmatpush1.msra.mxu0 0.0
  %304 = vmatprep.subr.mxu0 0.0
  %305 = vmatpush1.msra.mxu0 0.0
  %306 = vmatprep.subr.mxu0 0.0
  %307 = vmatpush1.msra.mxu0 0.0
  %308 = vmatprep.subr.mxu0 0.0
  %309 = vmatpush1.msra.mxu0 0.0
  %310 = vmatprep.subr.mxu0 0.0
  %311 = vmatpush1.msra.mxu0 0.0
  %312 = vmatprep.subr.mxu0 0.0
  %313 = vmatpush1.msra.mxu0 0.0
  %314 = vmatprep.subr.mxu0 0.0
  %315 = vmatpush1.msra.mxu0 0.0
  %316 = vmatprep.subr.mxu0 0.0
  %317 = vmatpush1.msra.mxu0 0.0
  %318 = vmatprep.subr.mxu0 0.0
  %319 = vmatpush1.msra.mxu0 0.0
  %320 = vmatprep.subr.mxu0 0.0
  %321 = vmatpush1.msra.mxu0 0.0
  %322 = vmatprep.subr.mxu0 0.0
  %323 = vmatpush1.msra.mxu0 0.0
  %324 = vmatprep.subr.mxu0 0.0
  %325 = vmatpush1.msra.mxu0 0.0
  %326 = vmatprep.subr.mxu0 0.0
  %327 = vmatpush1.msra.mxu0 0.0
  %328 = vmatprep.subr.mxu0 0.0
  %329 = vmatpush1.msra.mxu0 0.0
  %330 = vmatprep.subr.mxu0 0.0
  %331 = vmatpush1.msra.mxu0 0.0
  %332 = vmatprep.subr.mxu0 0.0
  %333 = vmatpush1.msra.mxu0 0.0
  %334 = vmatprep.subr.mxu0 0.0
  %335 = vmatpush1.msra.mxu0 0.0
  %336 = vmatprep.subr.mxu0 0.0
  %337 = vmatpush1.msra.mxu0 0.0
  %338 = vmatprep.subr.mxu0 0.0
  %339 = vmatpush1.msra.mxu0 0.0
  %340 = vmatprep.subr.mxu0 0.0
  %341 = vmatpush1.msra.mxu0 0.0
  %342 = vmatprep.subr.mxu0 0.0
  %343 = vmatpush1.msra.mxu0 0.0
  %344 = vmatprep.mubr.f32.mxu0 0.0
  %345 = vmatmul.mubr.f32.gmra.mrb[0].mxu0 %v206
  %v346 = vpop.f32.mrb[0].mxu0
  %v347 = vadd.f32 0.0, %v346
  %v348 = vpop.f32.mrb[0].mxu0
  %349 = vmatprep.mubr.f32.mxu0 0.0
  %350 = vmatmul.mubr.f32.gmra.mrb[0].mxu0 %v209
  %v351 = vpop.f32.mrb[0].mxu0
  %v352 = vadd.f32 0.0, %v351
  %v353 = vpop.f32.mrb[0].mxu0
  %354 = vmatprep.mubr.f32.mxu0 0.0
  %355 = vmatmul.mubr.f32.gmra.mrb[0].mxu0 %v212
  %v356 = vpop.f32.mrb[0].mxu0
  %v357 = vadd.f32 0.0, %v356
  %v358 = vpop.f32.mrb[0].mxu0
  %359 = vmatprep.mubr.f32.mxu0 0.0
  %360 = vmatmul.mubr.f32.gmra.mrb[0].mxu0 %v215
  %v361 = vpop.f32.mrb[0].mxu0
  %v362 = vadd.f32 0.0, %v361
  %v363 = vpop.f32.mrb[0].mxu0
  %364 = vmatprep.mubr.f32.mxu0 0.0
  %365 = vmatmul.mubr.f32.gmra.mrb[0].mxu0 %v218
  %v366 = vpop.f32.mrb[0].mxu0
  %v367 = vadd.f32 0.0, %v366
  %v368 = vpop.f32.mrb[0].mxu0
  %369 = vmatprep.mubr.f32.mxu0 0.0
  %370 = vmatmul.mubr.f32.gmra.mrb[0].mxu0 %v221
  %v371 = vpop.f32.mrb[0].mxu0
  %v372 = vadd.f32 0.0, %v371
  %v373 = vpop.f32.mrb[0].mxu0
  %374 = vmatprep.mubr.f32.mxu0 0.0
  %375 = vmatmul.mubr.f32.gmra.mrb[0].mxu0 %v224
  %v376 = vpop.f32.mrb[0].mxu0
  %v377 = vadd.f32 0.0, %v376
  %v378 = vpop.f32.mrb[0].mxu0
  %379 = vmatprep.mubr.f32.mxu0 0.0
  %380 = vmatmul.mubr.f32.gmra.mrb[0].mxu0 %v227
  %v381 = vpop.f32.mrb[0].mxu0
  %v382 = vadd.f32 0.0, %v381
  %v383 = vpop.f32.mrb[0].mxu0
  %384 = vmatprep.mubr.f32.mxu0 0.0
  %385 = vmatmul.mubr.f32.gmra.mrb[0].mxu0 %v230
  %v386 = vpop.f32.mrb[0].mxu0
  %v387 = vadd.f32 0.0, %v386
  %v388 = vpop.f32.mrb[0].mxu0
  %389 = vmatprep.mubr.f32.mxu0 0.0
  %390 = vmatmul.mubr.f32.gmra.mrb[0].mxu0 %v233
  %v391 = vpop.f32.mrb[0].mxu0
  %v392 = vadd.f32 0.0, %v391
  %v393 = vpop.f32.mrb[0].mxu0
  %394 = vmatprep.mubr.f32.mxu0 0.0
  %395 = vmatmul.mubr.f32.gmra.mrb[0].mxu0 %v236
  %v396 = vpop.f32.mrb[0].mxu0
  %v397 = vadd.f32 0.0, %v396
  %v398 = vpop.f32.mrb[0].mxu0
  %399 = vmatprep.mubr.f32.mxu0 0.0
  %400 = vmatmul.mubr.f32.gmra.mrb[0].mxu0 %v239
  %v401 = vpop.f32.mrb[0].mxu0
  %v402 = vadd.f32 0.0, %v401
  %v403 = vpop.f32.mrb[0].mxu0
  %404 = vmatprep.mubr.f32.mxu0 0.0
  %405 = vmatmul.mubr.f32.gmra.mrb[0].mxu0 %v242
  %v406 = vpop.f32.mrb[0].mxu0
  %v407 = vadd.f32 0.0, %v406
  %v408 = vpop.f32.mrb[0].mxu0
  %409 = vmatprep.mubr.f32.mxu0 0.0
  %410 = vmatmul.mubr.f32.gmra.mrb[0].mxu0 %v245
  %v411 = vpop.f32.mrb[0].mxu0
  %v412 = vadd.f32 0.0, %v411
  %v413 = vpop.f32.mrb[0].mxu0
  %414 = vmatprep.mubr.f32.mxu0 0.0
  %415 = vmatmul.mubr.f32.gmra.mrb[0].mxu0 %v248
  %v416 = vpop.f32.mrb[0].mxu0
  %v417 = vadd.f32 0.0, %v416
  %v418 = vpop.f32.mrb[0].mxu0
  %419 = vmatprep.mubr.f32.mxu0 0.0
  %420 = vmatmul.mubr.f32.gmra.mrb[0].mxu0 %v251
  %v421 = vpop.f32.mrb[0].mxu0
  %v422 = vadd.f32 0.0, %v421
  %v423 = vpop.f32.mrb[0].mxu0
  %424 = vmatprep.mubr.f32.mxu0 0.0
  %425 = vmatmul.mubr.f32.gmra.mrb[0].mxu0 %v254
  %v426 = vpop.f32.mrb[0].mxu0
  %v427 = vadd.f32 0.0, %v426
  %v428 = vpop.f32.mrb[0].mxu0
  %429 = vmatprep.mubr.f32.mxu0 0.0
  %430 = vmatmul.mubr.f32.gmra.mrb[0].mxu0 %v257
  %v431 = vpop.f32.mrb[0].mxu0
  %v432 = vadd.f32 0.0, %v431
  %v433 = vpop.f32.mrb[0].mxu0
  %434 = vmatprep.mubr.f32.mxu0 0.0
  %435 = vmatmul.mubr.f32.gmra.mrb[0].mxu0 %v260
  %v436 = vpop.f32.mrb[0].mxu0
  %v437 = vadd.f32 0.0, %v436
  %v438 = vpop.f32.mrb[0].mxu0
  %439 = vmatprep.mubr.f32.mxu0 0.0
  %440 = vmatmul.mubr.f32.gmra.mrb[0].mxu0 %v263
  %v441 = vpop.f32.mrb[0].mxu0
  %v442 = vadd.f32 0.0, %v441
  %v443 = vpop.f32.mrb[0].mxu0
  %444 = vmatprep.mubr.f32.mxu0 0.0
  %445 = vmatmul.mubr.f32.gmra.mrb[0].mxu0 %v266
  %v446 = vpop.f32.mrb[0].mxu0
  %v447 = vadd.f32 0.0, %v446
  %v448 = vpop.f32.mrb[0].mxu0
  %449 = vmatprep.mubr.f32.mxu0 0.0
  %450 = vmatmul.mubr.f32.gmra.mrb[0].mxu0 %v269
  %v451 = vpop.f32.mrb[0].mxu0
  %v452 = vadd.f32 0.0, %v451
  %v453 = vpop.f32.mrb[0].mxu0
  %454 = vmatprep.mubr.f32.mxu0 0.0
  %455 = vmatmul.mubr.f32.gmra.mrb[0].mxu0 %v272
  %v456 = vpop.f32.mrb[0].mxu0
  %v457 = vadd.f32 0.0, %v456
  %v458 = vpop.f32.mrb[0].mxu0
  %459 = vmatprep.mubr.f32.mxu0 0.0
  %460 = vmatmul.mubr.f32.gmra.mrb[0].mxu0 %v275
  %v461 = vpop.f32.mrb[0].mxu0
  %v462 = vadd.f32 0.0, %v461
  %v463 = vpop.f32.mrb[0].mxu0
  %464 = vmatprep.mubr.f32.mxu0 0.0
  %465 = vmatmul.mubr.f32.gmra.mrb[0].mxu0 %v278
  %v466 = vpop.f32.mrb[0].mxu0
  %v467 = vadd.f32 0.0, %v466
  %v468 = vpop.f32.mrb[0].mxu0
  %469 = vdwg.mxu0
  %v471 = vsel %vm204, %v88, 0
  %v474 = vsel %vm204, %v89, 0
  %v477 = vsel %vm204, %v90, 0
  %v480 = vsel %vm204, %v91, 0
  %v483 = vsel %vm204, %v92, 0
  %v486 = vsel %vm204, %v93, 0
  %v489 = vsel %vm204, %v94, 0
  %v492 = vsel %vm204, %v95, 0
  %v495 = vsel %vm204, %v96, 0
  %v498 = vsel %vm204, %v97, 0
  %v501 = vsel %vm204, %v98, 0
  %v504 = vsel %vm204, %v99, 0
  %v507 = vsel %vm204, %v100, 0
  %v510 = vsel %vm204, %v101, 0
  %v513 = vsel %vm204, %v102, 0
  %v516 = vsel %vm204, %v103, 0
  %v519 = vsel %vm204, %v104, 0
  %v522 = vsel %vm204, %v105, 0
  %v525 = vsel %vm204, %v106, 0
  %v528 = vsel %vm204, %v107, 0
  %v531 = vsel %vm204, %v108, 0
  %v534 = vsel %vm204, %v109, 0
  %v537 = vsel %vm204, %v110, 0
  %v540 = vsel %vm204, %v111, 0
  %v543 = vsel %vm204, %v112, 0
  %545 = vmatprep.subr.mxu0 0.0
  %546 = vmatpush1.msra.mxu0 %v188
  %547 = vmatprep.subr.mxu0 0.0
  %548 = vmatpush1.msra.mxu0 %v189
  %549 = vmatprep.subr.mxu0 0.0
  %550 = vmatpush1.msra.mxu0 %v190
  %551 = vmatprep.subr.mxu0 0.0
  %552 = vmatpush1.msra.mxu0 %v191
  %553 = vmatprep.subr.mxu0 0.0
  %554 = vmatpush1.msra.mxu0 %v192
  %555 = vmatprep.subr.mxu0 0.0
  %556 = vmatpush1.msra.mxu0 %v193
  %557 = vmatprep.subr.mxu0 0.0
  %558 = vmatpush1.msra.mxu0 %v194
  %559 = vmatprep.subr.mxu0 0.0
  %560 = vmatpush1.msra.mxu0 %v195
  %561 = vmatprep.subr.mxu0 0.0
  %562 = vmatpush1.msra.mxu0 0.0
  %563 = vmatprep.subr.mxu0 0.0
  %564 = vmatpush1.msra.mxu0 0.0
  %565 = vmatprep.subr.mxu0 0.0
  %566 = vmatpush1.msra.mxu0 0.0
  %567 = vmatprep.subr.mxu0 0.0
  %568 = vmatpush1.msra.mxu0 0.0
  %569 = vmatprep.subr.mxu0 0.0
  %570 = vmatpush1.msra.mxu0 0.0
  %571 = vmatprep.subr.mxu0 0.0
  %572 = vmatpush1.msra.mxu0 0.0
  %573 = vmatprep.subr.mxu0 0.0
  %574 = vmatpush1.msra.mxu0 0.0
  %575 = vmatprep.subr.mxu0 0.0
  %576 = vmatpush1.msra.mxu0 0.0
  %577 = vmatprep.subr.mxu0 0.0
  %578 = vmatpush1.msra.mxu0 0.0
  %579 = vmatprep.subr.mxu0 0.0
  %580 = vmatpush1.msra.mxu0 0.0
  %581 = vmatprep.subr.mxu0 0.0
  %582 = vmatpush1.msra.mxu0 0.0
  %583 = vmatprep.subr.mxu0 0.0
  %584 = vmatpush1.msra.mxu0 0.0
  %585 = vmatprep.subr.mxu0 0.0
  %586 = vmatpush1.msra.mxu0 0.0
  %587 = vmatprep.subr.mxu0 0.0
  %588 = vmatpush1.msra.mxu0 0.0
  %589 = vmatprep.subr.mxu0 0.0
  %590 = vmatpush1.msra.mxu0 0.0
  %591 = vmatprep.subr.mxu0 0.0
  %592 = vmatpush1.msra.mxu0 0.0
  %593 = vmatprep.subr.mxu0 0.0
  %594 = vmatpush1.msra.mxu0 0.0
  %595 = vmatprep.subr.mxu0 0.0
  %596 = vmatpush1.msra.mxu0 0.0
  %597 = vmatprep.subr.mxu0 0.0
  %598 = vmatpush1.msra.mxu0 0.0
  %599 = vmatprep.subr.mxu0 0.0
  %600 = vmatpush1.msra.mxu0 0.0
  %601 = vmatprep.subr.mxu0 0.0
  %602 = vmatpush1.msra.mxu0 0.0
  %603 = vmatprep.subr.mxu0 0.0
  %604 = vmatpush1.msra.mxu0 0.0
  %605 = vmatprep.subr.mxu0 0.0
  %606 = vmatpush1.msra.mxu0 0.0
  %607 = vmatprep.subr.mxu0 0.0
  %608 = vmatpush1.msra.mxu0 0.0
  %609 = vmatprep.mubr.f32.mxu0 0.0
  %610 = vmatmul.mubr.f32.gmra.mrb[0].mxu0 %v471
  %v611 = vpop.f32.mrb[0].mxu0
  %v612 = vadd.f32 %v347, %v611
  %v613 = vpop.f32.mrb[0].mxu0
  %614 = vmatprep.mubr.f32.mxu0 0.0
  %615 = vmatmul.mubr.f32.gmra.mrb[0].mxu0 %v474
  %v616 = vpop.f32.mrb[0].mxu0
  %v617 = vadd.f32 %v352, %v616
  %v618 = vpop.f32.mrb[0].mxu0
  %619 = vmatprep.mubr.f32.mxu0 0.0
  %620 = vmatmul.mubr.f32.gmra.mrb[0].mxu0 %v477
  %v621 = vpop.f32.mrb[0].mxu0
  %v622 = vadd.f32 %v357, %v621
  %v623 = vpop.f32.mrb[0].mxu0
  %624 = vmatprep.mubr.f32.mxu0 0.0
  %625 = vmatmul.mubr.f32.gmra.mrb[0].mxu0 %v480
  %v626 = vpop.f32.mrb[0].mxu0
  %v627 = vadd.f32 %v362, %v626
  %v628 = vpop.f32.mrb[0].mxu0
  %629 = vmatprep.mubr.f32.mxu0 0.0
  %630 = vmatmul.mubr.f32.gmra.mrb[0].mxu0 %v483
  %v631 = vpop.f32.mrb[0].mxu0
  %v632 = vadd.f32 %v367, %v631
  %v633 = vpop.f32.mrb[0].mxu0
  %634 = vmatprep.mubr.f32.mxu0 0.0
  %635 = vmatmul.mubr.f32.gmra.mrb[0].mxu0 %v486
  %v636 = vpop.f32.mrb[0].mxu0
  %v637 = vadd.f32 %v372, %v636
  %v638 = vpop.f32.mrb[0].mxu0
  %639 = vmatprep.mubr.f32.mxu0 0.0
  %640 = vmatmul.mubr.f32.gmra.mrb[0].mxu0 %v489
  %v641 = vpop.f32.mrb[0].mxu0
  %v642 = vadd.f32 %v377, %v641
  %v643 = vpop.f32.mrb[0].mxu0
  %644 = vmatprep.mubr.f32.mxu0 0.0
  %645 = vmatmul.mubr.f32.gmra.mrb[0].mxu0 %v492
  %v646 = vpop.f32.mrb[0].mxu0
  %v647 = vadd.f32 %v382, %v646
  %v648 = vpop.f32.mrb[0].mxu0
  %649 = vmatprep.mubr.f32.mxu0 0.0
  %650 = vmatmul.mubr.f32.gmra.mrb[0].mxu0 %v495
  %v651 = vpop.f32.mrb[0].mxu0
  %v652 = vadd.f32 %v387, %v651
  %v653 = vpop.f32.mrb[0].mxu0
  %654 = vmatprep.mubr.f32.mxu0 0.0
  %655 = vmatmul.mubr.f32.gmra.mrb[0].mxu0 %v498
  %v656 = vpop.f32.mrb[0].mxu0
  %v657 = vadd.f32 %v392, %v656
  %v658 = vpop.f32.mrb[0].mxu0
  %659 = vmatprep.mubr.f32.mxu0 0.0
  %660 = vmatmul.mubr.f32.gmra.mrb[0].mxu0 %v501
  %v661 = vpop.f32.mrb[0].mxu0
  %v662 = vadd.f32 %v397, %v661
  %v663 = vpop.f32.mrb[0].mxu0
  %664 = vmatprep.mubr.f32.mxu0 0.0
  %665 = vmatmul.mubr.f32.gmra.mrb[0].mxu0 %v504
  %v666 = vpop.f32.mrb[0].mxu0
  %v667 = vadd.f32 %v402, %v666
  %v668 = vpop.f32.mrb[0].mxu0
  %669 = vmatprep.mubr.f32.mxu0 0.0
  %670 = vmatmul.mubr.f32.gmra.mrb[0].mxu0 %v507
  %v671 = vpop.f32.mrb[0].mxu0
  %v672 = vadd.f32 %v407, %v671
  %v673 = vpop.f32.mrb[0].mxu0
  %674 = vmatprep.mubr.f32.mxu0 0.0
  %675 = vmatmul.mubr.f32.gmra.mrb[0].mxu0 %v510
  %v676 = vpop.f32.mrb[0].mxu0
  %v677 = vadd.f32 %v412, %v676
  %v678 = vpop.f32.mrb[0].mxu0
  %679 = vmatprep.mubr.f32.mxu0 0.0
  %680 = vmatmul.mubr.f32.gmra.mrb[0].mxu0 %v513
  %v681 = vpop.f32.mrb[0].mxu0
  %v682 = vadd.f32 %v417, %v681
  %v683 = vpop.f32.mrb[0].mxu0
  %684 = vmatprep.mubr.f32.mxu0 0.0
  %685 = vmatmul.mubr.f32.gmra.mrb[0].mxu0 %v516
  %v686 = vpop.f32.mrb[0].mxu0
  %v687 = vadd.f32 %v422, %v686
  %v688 = vpop.f32.mrb[0].mxu0
  %689 = vmatprep.mubr.f32.mxu0 0.0
  %690 = vmatmul.mubr.f32.gmra.mrb[0].mxu0 %v519
  %v691 = vpop.f32.mrb[0].mxu0
  %v692 = vadd.f32 %v427, %v691
  %v693 = vpop.f32.mrb[0].mxu0
  %694 = vmatprep.mubr.f32.mxu0 0.0
  %695 = vmatmul.mubr.f32.gmra.mrb[0].mxu0 %v522
  %v696 = vpop.f32.mrb[0].mxu0
  %v697 = vadd.f32 %v432, %v696
  %v698 = vpop.f32.mrb[0].mxu0
  %699 = vmatprep.mubr.f32.mxu0 0.0
  %700 = vmatmul.mubr.f32.gmra.mrb[0].mxu0 %v525
  %v701 = vpop.f32.mrb[0].mxu0
  %v702 = vadd.f32 %v437, %v701
  %v703 = vpop.f32.mrb[0].mxu0
  %704 = vmatprep.mubr.f32.mxu0 0.0
  %705 = vmatmul.mubr.f32.gmra.mrb[0].mxu0 %v528
  %v706 = vpop.f32.mrb[0].mxu0
  %v707 = vadd.f32 %v442, %v706
  %v708 = vpop.f32.mrb[0].mxu0
  %709 = vmatprep.mubr.f32.mxu0 0.0
  %710 = vmatmul.mubr.f32.gmra.mrb[0].mxu0 %v531
  %v711 = vpop.f32.mrb[0].mxu0
  %v712 = vadd.f32 %v447, %v711
  %v713 = vpop.f32.mrb[0].mxu0
  %714 = vmatprep.mubr.f32.mxu0 0.0
  %715 = vmatmul.mubr.f32.gmra.mrb[0].mxu0 %v534
  %v716 = vpop.f32.mrb[0].mxu0
  %v717 = vadd.f32 %v452, %v716
  %v718 = vpop.f32.mrb[0].mxu0
  %719 = vmatprep.mubr.f32.mxu0 0.0
  %720 = vmatmul.mubr.f32.gmra.mrb[0].mxu0 %v537
  %v721 = vpop.f32.mrb[0].mxu0
  %v722 = vadd.f32 %v457, %v721
  %v723 = vpop.f32.mrb[0].mxu0
  %724 = vmatprep.mubr.f32.mxu0 0.0
  %725 = vmatmul.mubr.f32.gmra.mrb[0].mxu0 %v540
  %v726 = vpop.f32.mrb[0].mxu0
  %v727 = vadd.f32 %v462, %v726
  %v728 = vpop.f32.mrb[0].mxu0
  %729 = vmatprep.mubr.f32.mxu0 0.0
  %730 = vmatmul.mubr.f32.gmra.mrb[0].mxu0 %v543
  %v731 = vpop.f32.mrb[0].mxu0
  %v732 = vadd.f32 %v467, %v731
  %v733 = vpop.f32.mrb[0].mxu0
  %734 = vdwg.mxu0
  %v735 = vld [vmem:[%s6] sm:$0x1]
  %v737 = vlaneseq
  %v738 = vshrl.u32 %v737, 7
  %v739 = vsub.s32 0, %v738
  %v740 = vrot.slane %v735, %v739
  %v742 = vadd.f32 %v612, %v740
  %v743 = vadd.f32 %v617, %v740
  %v744 = vadd.f32 %v622, %v740
  %v745 = vadd.f32 %v627, %v740
  %v746 = vadd.f32 %v632, %v740
  %v747 = vadd.f32 %v637, %v740
  %v748 = vadd.f32 %v642, %v740
  %v749 = vadd.f32 %v647, %v740
  %v750 = vadd.f32 %v652, %v740
  %v751 = vadd.f32 %v657, %v740
  %v752 = vadd.f32 %v662, %v740
  %v753 = vadd.f32 %v667, %v740
  %v754 = vadd.f32 %v672, %v740
  %v755 = vadd.f32 %v677, %v740
  %v756 = vadd.f32 %v682, %v740
  %v757 = vadd.f32 %v687, %v740
  %v758 = vadd.f32 %v692, %v740
  %v759 = vadd.f32 %v697, %v740
  %v760 = vadd.f32 %v702, %v740
  %v761 = vadd.f32 %v707, %v740
  %v762 = vadd.f32 %v712, %v740
  %v763 = vadd.f32 %v717, %v740
  %v764 = vadd.f32 %v722, %v740
  %v765 = vadd.f32 %v727, %v740
  %v766 = vadd.f32 %v732, %v740
  %v767 = vmax.f32 %v742, 0.0
  %v768 = vmax.f32 %v743, 0.0
  %v769 = vmax.f32 %v744, 0.0
  %v770 = vmax.f32 %v745, 0.0
  %v771 = vmax.f32 %v746, 0.0
  %v772 = vmax.f32 %v747, 0.0
  %v773 = vmax.f32 %v748, 0.0
  %v774 = vmax.f32 %v749, 0.0
  %v775 = vmax.f32 %v750, 0.0
  %v776 = vmax.f32 %v751, 0.0
  %v777 = vmax.f32 %v752, 0.0
  %v778 = vmax.f32 %v753, 0.0
  %v779 = vmax.f32 %v754, 0.0
  %v780 = vmax.f32 %v755, 0.0
  %v781 = vmax.f32 %v756, 0.0
  %v782 = vmax.f32 %v757, 0.0
  %v783 = vmax.f32 %v758, 0.0
  %v784 = vmax.f32 %v759, 0.0
  %v785 = vmax.f32 %v760, 0.0
  %v786 = vmax.f32 %v761, 0.0
  %v787 = vmax.f32 %v762, 0.0
  %v788 = vmax.f32 %v763, 0.0
  %v789 = vmax.f32 %v764, 0.0
  %v790 = vmax.f32 %v765, 0.0
  %v791 = vmax.f32 %v766, 0.0
  %792 = vst [vmem:[#allocation2] sm:$0xff] %v767
  %793 = vst [vmem:[#allocation2 + $0x8] sm:$0xff] %v768
  %794 = vst [vmem:[#allocation2 + $0x10] sm:$0xff] %v769
  %795 = vst [vmem:[#allocation2 + $0x18] sm:$0xff] %v770
  %796 = vst [vmem:[#allocation2 + $0x20] sm:$0xff] %v771
  %797 = vst [vmem:[#allocation2 + $0x28] sm:$0xff] %v772
  %798 = vst [vmem:[#allocation2 + $0x30] sm:$0xff] %v773
  %799 = vst [vmem:[#allocation2 + $0x38] sm:$0xff] %v774
  %800 = vst [vmem:[#allocation2 + $0x40] sm:$0xff] %v775
  %801 = vst [vmem:[#allocation2 + $0x48] sm:$0xff] %v776
  %802 = vst [vmem:[#allocation2 + $0x50] sm:$0xff] %v777
  %803 = vst [vmem:[#allocation2 + $0x58] sm:$0xff] %v778
  %804 = vst [vmem:[#allocation2 + $0x60] sm:$0xff] %v779
  %805 = vst [vmem:[#allocation2 + $0x68] sm:$0xff] %v780
  %806 = vst [vmem:[#allocation2 + $0x70] sm:$0xff] %v781
  %807 = vst [vmem:[#allocation2 + $0x78] sm:$0xff] %v782
  %808 = vst [vmem:[#allocation2 + $0x80] sm:$0xff] %v783
  %809 = vst [vmem:[#allocation2 + $0x88] sm:$0xff] %v784
  %810 = vst [vmem:[#allocation2 + $0x90] sm:$0xff] %v785
  %811 = vst [vmem:[#allocation2 + $0x98] sm:$0xff] %v786
  %812 = vst [vmem:[#allocation2 + $0xa0] sm:$0xff] %v787
  %813 = vst [vmem:[#allocation2 + $0xa8] sm:$0xff] %v788
  %814 = vst [vmem:[#allocation2 + $0xb0] sm:$0xff] %v789
  %815 = vst [vmem:[#allocation2 + $0xb8] sm:$0xff] %v790
  %816 = vst [vmem:[#allocation2 + $0xc0] sm:$0xff] %v791
  %v817 = vld [vmem:[#allocation2] sm:$0xff]
  %v818 = vld [vmem:[#allocation2 + $0x8] sm:$0xff]
  %v819 = vld [vmem:[#allocation2 + $0x10] sm:$0xff]
  %v820 = vld [vmem:[#allocation2 + $0x18] sm:$0xff]
  %v821 = vld [vmem:[#allocation2 + $0x20] sm:$0xff]
  %v822 = vld [vmem:[#allocation2 + $0x28] sm:$0xff]
  %v823 = vld [vmem:[#allocation2 + $0x30] sm:$0xff]
  %v824 = vld [vmem:[#allocation2 + $0x38] sm:$0xff]
  %v825 = vld [vmem:[#allocation2 + $0x40] sm:$0xff]
  %v826 = vld [vmem:[#allocation2 + $0x48] sm:$0xff]
  %v827 = vld [vmem:[#allocation2 + $0x50] sm:$0xff]
  %v828 = vld [vmem:[#allocation2 + $0x58] sm:$0xff]
  %v829 = vld [vmem:[#allocation2 + $0x60] sm:$0xff]
  %v830 = vld [vmem:[#allocation2 + $0x68] sm:$0xff]
  %v831 = vld [vmem:[#allocation2 + $0x70] sm:$0xff]
  %v832 = vld [vmem:[#allocation2 + $0x78] sm:$0xff]
  %v833 = vld [vmem:[#allocation2 + $0x80] sm:$0xff]
  %v834 = vld [vmem:[#allocation2 + $0x88] sm:$0xff]
  %v835 = vld [vmem:[#allocation2 + $0x90] sm:$0xff]
  %v836 = vld [vmem:[#allocation2 + $0x98] sm:$0xff]
  %v837 = vld [vmem:[#allocation2 + $0xa0] sm:$0xff]
  %v838 = vld [vmem:[#allocation2 + $0xa8] sm:$0xff]
  %v839 = vld [vmem:[#allocation2 + $0xb0] sm:$0xff]
  %v840 = vld [vmem:[#allocation2 + $0xb8] sm:$0xff]
  %v841 = vld [vmem:[#allocation2 + $0xc0] sm:$0xff]
  %v842 = vld [vmem:[%s7] sm:$0xff]
  %v843 = vld [vmem:[%s7 + $0x8] sm:$0xff]
  %v844 = vld [vmem:[%s7 + $0x10] sm:$0xff]
  %v845 = vld [vmem:[%s7 + $0x18] sm:$0xff]
  %v846 = vld [vmem:[%s7 + $0x20] sm:$0xff]
  %v847 = vld [vmem:[%s7 + $0x28] sm:$0xff]
  %v848 = vld [vmem:[%s7 + $0x30] sm:$0xff]
  %v849 = vld [vmem:[%s7 + $0x38] sm:$0xff]
  %v850 = vld [vmem:[%s7 + $0x40] sm:$0xff]
  %v851 = vld [vmem:[%s7 + $0x48] sm:$0xff]
  %v852 = vld [vmem:[%s7 + $0x50] sm:$0xff]
  %v853 = vld [vmem:[%s7 + $0x58] sm:$0xff]
  %v854 = vld [vmem:[%s7 + $0x60] sm:$0xff]
  %v855 = vld [vmem:[%s7 + $0x68] sm:$0xff]
  %v856 = vld [vmem:[%s7 + $0x70] sm:$0xff]
  %v857 = vld [vmem:[%s7 + $0x78] sm:$0xff]
  %v858 = vld [vmem:[%s8] sm:$0x1]
  %v860 = vlaneseq
  %v861 = vshrl.u32 %v860, 7
  %v862 = vsub.s32 0, %v861
  %v863 = vrot.slane %v858, %v862
  %865 = vmatprep.subr.mxu0 0.0
  %866 = vmatpush1.msra.mxu0 %v842
  %867 = vmatprep.subr.mxu0 0.0
  %868 = vmatpush1.msra.mxu0 %v843
  %869 = vmatprep.subr.mxu0 0.0
  %870 = vmatpush1.msra.mxu0 %v844
  %871 = vmatprep.subr.mxu0 0.0
  %872 = vmatpush1.msra.mxu0 %v845
  %873 = vmatprep.subr.mxu0 0.0
  %874 = vmatpush1.msra.mxu0 %v846
  %875 = vmatprep.subr.mxu0 0.0
  %876 = vmatpush1.msra.mxu0 %v847
  %877 = vmatprep.subr.mxu0 0.0
  %878 = vmatpush1.msra.mxu0 %v848
  %879 = vmatprep.subr.mxu0 0.0
  %880 = vmatpush1.msra.mxu0 %v849
  %881 = vmatprep.subr.mxu0 0.0
  %882 = vmatpush1.msra.mxu0 %v850
  %883 = vmatprep.subr.mxu0 0.0
  %884 = vmatpush1.msra.mxu0 %v851
  %885 = vmatprep.subr.mxu0 0.0
  %886 = vmatpush1.msra.mxu0 %v852
  %887 = vmatprep.subr.mxu0 0.0
  %888 = vmatpush1.msra.mxu0 %v853
  %889 = vmatprep.subr.mxu0 0.0
  %890 = vmatpush1.msra.mxu0 %v854
  %891 = vmatprep.subr.mxu0 0.0
  %892 = vmatpush1.msra.mxu0 %v855
  %893 = vmatprep.subr.mxu0 0.0
  %894 = vmatpush1.msra.mxu0 %v856
  %895 = vmatprep.subr.mxu0 0.0
  %896 = vmatpush1.msra.mxu0 %v857
  %897 = vmatprep.subr.mxu0 0.0
  %898 = vmatpush1.msra.mxu0 0.0
  %899 = vmatprep.subr.mxu0 0.0
  %900 = vmatpush1.msra.mxu0 0.0
  %901 = vmatprep.subr.mxu0 0.0
  %902 = vmatpush1.msra.mxu0 0.0
  %903 = vmatprep.subr.mxu0 0.0
  %904 = vmatpush1.msra.mxu0 0.0
  %905 = vmatprep.subr.mxu0 0.0
  %906 = vmatpush1.msra.mxu0 0.0
  %907 = vmatprep.subr.mxu0 0.0
  %908 = vmatpush1.msra.mxu0 0.0
  %909 = vmatprep.subr.mxu0 0.0
  %910 = vmatpush1.msra.mxu0 0.0
  %911 = vmatprep.subr.mxu0 0.0
  %912 = vmatpush1.msra.mxu0 0.0
  %913 = vmatprep.subr.mxu0 0.0
  %914 = vmatpush1.msra.mxu0 0.0
  %915 = vmatprep.subr.mxu0 0.0
  %916 = vmatpush1.msra.mxu0 0.0
  %917 = vmatprep.subr.mxu0 0.0
  %918 = vmatpush1.msra.mxu0 0.0
  %919 = vmatprep.subr.mxu0 0.0
  %920 = vmatpush1.msra.mxu0 0.0
  %921 = vmatprep.subr.mxu0 0.0
  %922 = vmatpush1.msra.mxu0 0.0
  %923 = vmatprep.subr.mxu0 0.0
  %924 = vmatpush1.msra.mxu0 0.0
  %925 = vmatprep.subr.mxu0 0.0
  %926 = vmatpush1.msra.mxu0 0.0
  %927 = vmatprep.subr.mxu0 0.0
  %928 = vmatpush1.msra.mxu0 0.0
  %929 = vmatprep.mubr.f32.mxu0 0.0
  %930 = vmatmul.mubr.f32.gmra.mrb[0].mxu0 %v817
  %v931 = vpop.f32.mrb[0].mxu0
  %v932 = vadd.f32 %v863, %v931
  %v933 = vpop.f32.mrb[0].mxu0
  %934 = vmatprep.mubr.f32.mxu0 0.0
  %935 = vmatmul.mubr.f32.gmra.mrb[0].mxu0 %v818
  %v936 = vpop.f32.mrb[0].mxu0
  %v937 = vadd.f32 %v863, %v936
  %v938 = vpop.f32.mrb[0].mxu0
  %939 = vmatprep.mubr.f32.mxu0 0.0
  %940 = vmatmul.mubr.f32.gmra.mrb[0].mxu0 %v819
  %v941 = vpop.f32.mrb[0].mxu0
  %v942 = vadd.f32 %v863, %v941
  %v943 = vpop.f32.mrb[0].mxu0
  %944 = vmatprep.mubr.f32.mxu0 0.0
  %945 = vmatmul.mubr.f32.gmra.mrb[0].mxu0 %v820
  %v946 = vpop.f32.mrb[0].mxu0
  %v947 = vadd.f32 %v863, %v946
  %v948 = vpop.f32.mrb[0].mxu0
  %949 = vmatprep.mubr.f32.mxu0 0.0
  %950 = vmatmul.mubr.f32.gmra.mrb[0].mxu0 %v821
  %v951 = vpop.f32.mrb[0].mxu0
  %v952 = vadd.f32 %v863, %v951
  %v953 = vpop.f32.mrb[0].mxu0
  %954 = vmatprep.mubr.f32.mxu0 0.0
  %955 = vmatmul.mubr.f32.gmra.mrb[0].mxu0 %v822
  %v956 = vpop.f32.mrb[0].mxu0
  %v957 = vadd.f32 %v863, %v956
  %v958 = vpop.f32.mrb[0].mxu0
  %959 = vmatprep.mubr.f32.mxu0 0.0
  %960 = vmatmul.mubr.f32.gmra.mrb[0].mxu0 %v823
  %v961 = vpop.f32.mrb[0].mxu0
  %v962 = vadd.f32 %v863, %v961
  %v963 = vpop.f32.mrb[0].mxu0
  %964 = vmatprep.mubr.f32.mxu0 0.0
  %965 = vmatmul.mubr.f32.gmra.mrb[0].mxu0 %v824
  %v966 = vpop.f32.mrb[0].mxu0
  %v967 = vadd.f32 %v863, %v966
  %v968 = vpop.f32.mrb[0].mxu0
  %969 = vmatprep.mubr.f32.mxu0 0.0
  %970 = vmatmul.mubr.f32.gmra.mrb[0].mxu0 %v825
  %v971 = vpop.f32.mrb[0].mxu0
  %v972 = vadd.f32 %v863, %v971
  %v973 = vpop.f32.mrb[0].mxu0
  %974 = vmatprep.mubr.f32.mxu0 0.0
  %975 = vmatmul.mubr.f32.gmra.mrb[0].mxu0 %v826
  %v976 = vpop.f32.mrb[0].mxu0
  %v977 = vadd.f32 %v863, %v976
  %v978 = vpop.f32.mrb[0].mxu0
  %979 = vmatprep.mubr.f32.mxu0 0.0
  %980 = vmatmul.mubr.f32.gmra.mrb[0].mxu0 %v827
  %v981 = vpop.f32.mrb[0].mxu0
  %v982 = vadd.f32 %v863, %v981
  %v983 = vpop.f32.mrb[0].mxu0
  %984 = vmatprep.mubr.f32.mxu0 0.0
  %985 = vmatmul.mubr.f32.gmra.mrb[0].mxu0 %v828
  %v986 = vpop.f32.mrb[0].mxu0
  %v987 = vadd.f32 %v863, %v986
  %v988 = vpop.f32.mrb[0].mxu0
  %989 = vmatprep.mubr.f32.mxu0 0.0
  %990 = vmatmul.mubr.f32.gmra.mrb[0].mxu0 %v829
  %v991 = vpop.f32.mrb[0].mxu0
  %v992 = vadd.f32 %v863, %v991
  %v993 = vpop.f32.mrb[0].mxu0
  %994 = vmatprep.mubr.f32.mxu0 0.0
  %995 = vmatmul.mubr.f32.gmra.mrb[0].mxu0 %v830
  %v996 = vpop.f32.mrb[0].mxu0
  %v997 = vadd.f32 %v863, %v996
  %v998 = vpop.f32.mrb[0].mxu0
  %999 = vmatprep.mubr.f32.mxu0 0.0
  %1000 = vmatmul.mubr.f32.gmra.mrb[0].mxu0 %v831
  %v1001 = vpop.f32.mrb[0].mxu0
  %v1002 = vadd.f32 %v863, %v1001
  %v1003 = vpop.f32.mrb[0].mxu0
  %1004 = vmatprep.mubr.f32.mxu0 0.0
  %1005 = vmatmul.mubr.f32.gmra.mrb[0].mxu0 %v832
  %v1006 = vpop.f32.mrb[0].mxu0
  %v1007 = vadd.f32 %v863, %v1006
  %v1008 = vpop.f32.mrb[0].mxu0
  %1009 = vmatprep.mubr.f32.mxu0 0.0
  %1010 = vmatmul.mubr.f32.gmra.mrb[0].mxu0 %v833
  %v1011 = vpop.f32.mrb[0].mxu0
  %v1012 = vadd.f32 %v863, %v1011
  %v1013 = vpop.f32.mrb[0].mxu0
  %1014 = vmatprep.mubr.f32.mxu0 0.0
  %1015 = vmatmul.mubr.f32.gmra.mrb[0].mxu0 %v834
  %v1016 = vpop.f32.mrb[0].mxu0
  %v1017 = vadd.f32 %v863, %v1016
  %v1018 = vpop.f32.mrb[0].mxu0
  %1019 = vmatprep.mubr.f32.mxu0 0.0
  %1020 = vmatmul.mubr.f32.gmra.mrb[0].mxu0 %v835
  %v1021 = vpop.f32.mrb[0].mxu0
  %v1022 = vadd.f32 %v863, %v1021
  %v1023 = vpop.f32.mrb[0].mxu0
  %1024 = vmatprep.mubr.f32.mxu0 0.0
  %1025 = vmatmul.mubr.f32.gmra.mrb[0].mxu0 %v836
  %v1026 = vpop.f32.mrb[0].mxu0
  %v1027 = vadd.f32 %v863, %v1026
  %v1028 = vpop.f32.mrb[0].mxu0
  %1029 = vmatprep.mubr.f32.mxu0 0.0
  %1030 = vmatmul.mubr.f32.gmra.mrb[0].mxu0 %v837
  %v1031 = vpop.f32.mrb[0].mxu0
  %v1032 = vadd.f32 %v863, %v1031
  %v1033 = vpop.f32.mrb[0].mxu0
  %1034 = vmatprep.mubr.f32.mxu0 0.0
  %1035 = vmatmul.mubr.f32.gmra.mrb[0].mxu0 %v838
  %v1036 = vpop.f32.mrb[0].mxu0
  %v1037 = vadd.f32 %v863, %v1036
  %v1038 = vpop.f32.mrb[0].mxu0
  %1039 = vmatprep.mubr.f32.mxu0 0.0
  %1040 = vmatmul.mubr.f32.gmra.mrb[0].mxu0 %v839
  %v1041 = vpop.f32.mrb[0].mxu0
  %v1042 = vadd.f32 %v863, %v1041
  %v1043 = vpop.f32.mrb[0].mxu0
  %1044 = vmatprep.mubr.f32.mxu0 0.0
  %1045 = vmatmul.mubr.f32.gmra.mrb[0].mxu0 %v840
  %v1046 = vpop.f32.mrb[0].mxu0
  %v1047 = vadd.f32 %v863, %v1046
  %v1048 = vpop.f32.mrb[0].mxu0
  %1049 = vmatprep.mubr.f32.mxu0 0.0
  %1050 = vmatmul.mubr.f32.gmra.mrb[0].mxu0 %v841
  %v1051 = vpop.f32.mrb[0].mxu0
  %v1052 = vadd.f32 %v863, %v1051
  %v1053 = vpop.f32.mrb[0].mxu0
  %1054 = vdwg.mxu0
  %v1055 = vmax.f32 %v932, 0.0
  %v1056 = vmax.f32 %v937, 0.0
  %v1057 = vmax.f32 %v942, 0.0
  %v1058 = vmax.f32 %v947, 0.0
  %v1059 = vmax.f32 %v952, 0.0
  %v1060 = vmax.f32 %v957, 0.0
  %v1061 = vmax.f32 %v962, 0.0
  %v1062 = vmax.f32 %v967, 0.0
  %v1063 = vmax.f32 %v972, 0.0
  %v1064 = vmax.f32 %v977, 0.0
  %v1065 = vmax.f32 %v982, 0.0
  %v1066 = vmax.f32 %v987, 0.0
  %v1067 = vmax.f32 %v992, 0.0
  %v1068 = vmax.f32 %v997, 0.0
  %v1069 = vmax.f32 %v1002, 0.0
  %v1070 = vmax.f32 %v1007, 0.0
  %v1071 = vmax.f32 %v1012, 0.0
  %v1072 = vmax.f32 %v1017, 0.0
  %v1073 = vmax.f32 %v1022, 0.0
  %v1074 = vmax.f32 %v1027, 0.0
  %v1075 = vmax.f32 %v1032, 0.0
  %v1076 = vmax.f32 %v1037, 0.0
  %v1077 = vmax.f32 %v1042, 0.0
  %v1078 = vmax.f32 %v1047, 0.0
  %v1079 = vmax.f32 %v1052, 0.0
  %1080 = vst [vmem:[#allocation2] sm:$0xff] %v1055
  %1081 = vst [vmem:[#allocation2 + $0x8] sm:$0xff] %v1056
  %1082 = vst [vmem:[#allocation2 + $0x10] sm:$0xff] %v1057
  %1083 = vst [vmem:[#allocation2 + $0x18] sm:$0xff] %v1058
  %1084 = vst [vmem:[#allocation2 + $0x20] sm:$0xff] %v1059
  %1085 = vst [vmem:[#allocation2 + $0x28] sm:$0xff] %v1060
  %1086 = vst [vmem:[#allocation2 + $0x30] sm:$0xff] %v1061
  %1087 = vst [vmem:[#allocation2 + $0x38] sm:$0xff] %v1062
  %1088 = vst [vmem:[#allocation2 + $0x40] sm:$0xff] %v1063
  %1089 = vst [vmem:[#allocation2 + $0x48] sm:$0xff] %v1064
  %1090 = vst [vmem:[#allocation2 + $0x50] sm:$0xff] %v1065
  %1091 = vst [vmem:[#allocation2 + $0x58] sm:$0xff] %v1066
  %1092 = vst [vmem:[#allocation2 + $0x60] sm:$0xff] %v1067
  %1093 = vst [vmem:[#allocation2 + $0x68] sm:$0xff] %v1068
  %1094 = vst [vmem:[#allocation2 + $0x70] sm:$0xff] %v1069
  %1095 = vst [vmem:[#allocation2 + $0x78] sm:$0xff] %v1070
  %1096 = vst [vmem:[#allocation2 + $0x80] sm:$0xff] %v1071
  %1097 = vst [vmem:[#allocation2 + $0x88] sm:$0xff] %v1072
  %1098 = vst [vmem:[#allocation2 + $0x90] sm:$0xff] %v1073
  %1099 = vst [vmem:[#allocation2 + $0x98] sm:$0xff] %v1074
  %1100 = vst [vmem:[#allocation2 + $0xa0] sm:$0xff] %v1075
  %1101 = vst [vmem:[#allocation2 + $0xa8] sm:$0xff] %v1076
  %1102 = vst [vmem:[#allocation2 + $0xb0] sm:$0xff] %v1077
  %1103 = vst [vmem:[#allocation2 + $0xb8] sm:$0xff] %v1078
  %1104 = vst [vmem:[#allocation2 + $0xc0] sm:$0xff] %v1079
  %v1105 = vld [vmem:[#allocation2] sm:$0xff]
  %v1106 = vld [vmem:[#allocation2 + $0x8] sm:$0xff]
  %v1107 = vld [vmem:[#allocation2 + $0x10] sm:$0xff]
  %v1108 = vld [vmem:[#allocation2 + $0x18] sm:$0xff]
  %v1109 = vld [vmem:[#allocation2 + $0x20] sm:$0xff]
  %v1110 = vld [vmem:[#allocation2 + $0x28] sm:$0xff]
  %v1111 = vld [vmem:[#allocation2 + $0x30] sm:$0xff]
  %v1112 = vld [vmem:[#allocation2 + $0x38] sm:$0xff]
  %v1113 = vld [vmem:[#allocation2 + $0x40] sm:$0xff]
  %v1114 = vld [vmem:[#allocation2 + $0x48] sm:$0xff]
  %v1115 = vld [vmem:[#allocation2 + $0x50] sm:$0xff]
  %v1116 = vld [vmem:[#allocation2 + $0x58] sm:$0xff]
  %v1117 = vld [vmem:[#allocation2 + $0x60] sm:$0xff]
  %v1118 = vld [vmem:[#allocation2 + $0x68] sm:$0xff]
  %v1119 = vld [vmem:[#allocation2 + $0x70] sm:$0xff]
  %v1120 = vld [vmem:[#allocation2 + $0x78] sm:$0xff]
  %v1121 = vld [vmem:[#allocation2 + $0x80] sm:$0xff]
  %v1122 = vld [vmem:[#allocation2 + $0x88] sm:$0xff]
  %v1123 = vld [vmem:[#allocation2 + $0x90] sm:$0xff]
  %v1124 = vld [vmem:[#allocation2 + $0x98] sm:$0xff]
  %v1125 = vld [vmem:[#allocation2 + $0xa0] sm:$0xff]
  %v1126 = vld [vmem:[#allocation2 + $0xa8] sm:$0xff]
  %v1127 = vld [vmem:[#allocation2 + $0xb0] sm:$0xff]
  %v1128 = vld [vmem:[#allocation2 + $0xb8] sm:$0xff]
  %v1129 = vld [vmem:[#allocation2 + $0xc0] sm:$0xff]
  %v1130 = vld [vmem:[%s9] sm:$0xff]
  %v1131 = vld [vmem:[%s9 + $0x8] sm:$0xff]
  %v1132 = vld [vmem:[%s9 + $0x10] sm:$0xff]
  %v1133 = vld [vmem:[%s9 + $0x18] sm:$0xff]
  %v1134 = vld [vmem:[%s9 + $0x20] sm:$0xff]
  %v1135 = vld [vmem:[%s9 + $0x28] sm:$0xff]
  %v1136 = vld [vmem:[%s9 + $0x30] sm:$0xff]
  %v1137 = vld [vmem:[%s9 + $0x38] sm:$0xff]
  %v1138 = vld [vmem:[%s9 + $0x40] sm:$0xff]
  %v1139 = vld [vmem:[%s9 + $0x48] sm:$0xff]
  %v1140 = vld [vmem:[%s9 + $0x50] sm:$0xff]
  %v1141 = vld [vmem:[%s9 + $0x58] sm:$0xff]
  %v1142 = vld [vmem:[%s9 + $0x60] sm:$0xff]
  %v1143 = vld [vmem:[%s9 + $0x68] sm:$0xff]
  %v1144 = vld [vmem:[%s9 + $0x70] sm:$0xff]
  %v1145 = vld [vmem:[%s9 + $0x78] sm:$0xff]
  %v1146 = vld [vmem:[%s10] sm:$0x1]
  %v1148 = vlaneseq
  %v1149 = vshrl.u32 %v1148, 7
  %v1150 = vsub.s32 0, %v1149
  %v1151 = vrot.slane %v1146, %v1150
  %1153 = vmatprep.subr.mxu0 0.0
  %1154 = vmatpush1.msra.mxu0 %v1130
  %1155 = vmatprep.subr.mxu0 0.0
  %1156 = vmatpush1.msra.mxu0 %v1131
  %1157 = vmatprep.subr.mxu0 0.0
  %1158 = vmatpush1.msra.mxu0 %v1132
  %1159 = vmatprep.subr.mxu0 0.0
  %1160 = vmatpush1.msra.mxu0 %v1133
  %1161 = vmatprep.subr.mxu0 0.0
  %1162 = vmatpush1.msra.mxu0 %v1134
  %1163 = vmatprep.subr.mxu0 0.0
  %1164 = vmatpush1.msra.mxu0 %v1135
  %1165 = vmatprep.subr.mxu0 0.0
  %1166 = vmatpush1.msra.mxu0 %v1136
  %1167 = vmatprep.subr.mxu0 0.0
  %1168 = vmatpush1.msra.mxu0 %v1137
  %1169 = vmatprep.subr.mxu0 0.0
  %1170 = vmatpush1.msra.mxu0 %v1138
  %1171 = vmatprep.subr.mxu0 0.0
  %1172 = vmatpush1.msra.mxu0 %v1139
  %1173 = vmatprep.subr.mxu0 0.0
  %1174 = vmatpush1.msra.mxu0 %v1140
  %1175 = vmatprep.subr.mxu0 0.0
  %1176 = vmatpush1.msra.mxu0 %v1141
  %1177 = vmatprep.subr.mxu0 0.0
  %1178 = vmatpush1.msra.mxu0 %v1142
  %1179 = vmatprep.subr.mxu0 0.0
  %1180 = vmatpush1.msra.mxu0 %v1143
  %1181 = vmatprep.subr.mxu0 0.0
  %1182 = vmatpush1.msra.mxu0 %v1144
  %1183 = vmatprep.subr.mxu0 0.0
  %1184 = vmatpush1.msra.mxu0 %v1145
  %1185 = vmatprep.subr.mxu0 0.0
  %1186 = vmatpush1.msra.mxu0 0.0
  %1187 = vmatprep.subr.mxu0 0.0
  %1188 = vmatpush1.msra.mxu0 0.0
  %1189 = vmatprep.subr.mxu0 0.0
  %1190 = vmatpush1.msra.mxu0 0.0
  %1191 = vmatprep.subr.mxu0 0.0
  %1192 = vmatpush1.msra.mxu0 0.0
  %1193 = vmatprep.subr.mxu0 0.0
  %1194 = vmatpush1.msra.mxu0 0.0
  %1195 = vmatprep.subr.mxu0 0.0
  %1196 = vmatpush1.msra.mxu0 0.0
  %1197 = vmatprep.subr.mxu0 0.0
  %1198 = vmatpush1.msra.mxu0 0.0
  %1199 = vmatprep.subr.mxu0 0.0
  %1200 = vmatpush1.msra.mxu0 0.0
  %1201 = vmatprep.subr.mxu0 0.0
  %1202 = vmatpush1.msra.mxu0 0.0
  %1203 = vmatprep.subr.mxu0 0.0
  %1204 = vmatpush1.msra.mxu0 0.0
  %1205 = vmatprep.subr.mxu0 0.0
  %1206 = vmatpush1.msra.mxu0 0.0
  %1207 = vmatprep.subr.mxu0 0.0
  %1208 = vmatpush1.msra.mxu0 0.0
  %1209 = vmatprep.subr.mxu0 0.0
  %1210 = vmatpush1.msra.mxu0 0.0
  %1211 = vmatprep.subr.mxu0 0.0
  %1212 = vmatpush1.msra.mxu0 0.0
  %1213 = vmatprep.subr.mxu0 0.0
  %1214 = vmatpush1.msra.mxu0 0.0
  %1215 = vmatprep.subr.mxu0 0.0
  %1216 = vmatpush1.msra.mxu0 0.0
  %1217 = vmatprep.mubr.f32.mxu0 0.0
  %1218 = vmatmul.mubr.f32.gmra.mrb[0].mxu0 %v1105
  %v1219 = vpop.f32.mrb[0].mxu0
  %v1220 = vadd.f32 %v1151, %v1219
  %v1221 = vpop.f32.mrb[0].mxu0
  %1222 = vmatprep.mubr.f32.mxu0 0.0
  %1223 = vmatmul.mubr.f32.gmra.mrb[0].mxu0 %v1106
  %v1224 = vpop.f32.mrb[0].mxu0
  %v1225 = vadd.f32 %v1151, %v1224
  %v1226 = vpop.f32.mrb[0].mxu0
  %1227 = vmatprep.mubr.f32.mxu0 0.0
  %1228 = vmatmul.mubr.f32.gmra.mrb[0].mxu0 %v1107
  %v1229 = vpop.f32.mrb[0].mxu0
  %v1230 = vadd.f32 %v1151, %v1229
  %v1231 = vpop.f32.mrb[0].mxu0
  %1232 = vmatprep.mubr.f32.mxu0 0.0
  %1233 = vmatmul.mubr.f32.gmra.mrb[0].mxu0 %v1108
  %v1234 = vpop.f32.mrb[0].mxu0
  %v1235 = vadd.f32 %v1151, %v1234
  %v1236 = vpop.f32.mrb[0].mxu0
  %1237 = vmatprep.mubr.f32.mxu0 0.0
  %1238 = vmatmul.mubr.f32.gmra.mrb[0].mxu0 %v1109
  %v1239 = vpop.f32.mrb[0].mxu0
  %v1240 = vadd.f32 %v1151, %v1239
  %v1241 = vpop.f32.mrb[0].mxu0
  %1242 = vmatprep.mubr.f32.mxu0 0.0
  %1243 = vmatmul.mubr.f32.gmra.mrb[0].mxu0 %v1110
  %v1244 = vpop.f32.mrb[0].mxu0
  %v1245 = vadd.f32 %v1151, %v1244
  %v1246 = vpop.f32.mrb[0].mxu0
  %1247 = vmatprep.mubr.f32.mxu0 0.0
  %1248 = vmatmul.mubr.f32.gmra.mrb[0].mxu0 %v1111
  %v1249 = vpop.f32.mrb[0].mxu0
  %v1250 = vadd.f32 %v1151, %v1249
  %v1251 = vpop.f32.mrb[0].mxu0
  %1252 = vmatprep.mubr.f32.mxu0 0.0
  %1253 = vmatmul.mubr.f32.gmra.mrb[0].mxu0 %v1112
  %v1254 = vpop.f32.mrb[0].mxu0
  %v1255 = vadd.f32 %v1151, %v1254
  %v1256 = vpop.f32.mrb[0].mxu0
  %1257 = vmatprep.mubr.f32.mxu0 0.0
  %1258 = vmatmul.mubr.f32.gmra.mrb[0].mxu0 %v1113
  %v1259 = vpop.f32.mrb[0].mxu0
  %v1260 = vadd.f32 %v1151, %v1259
  %v1261 = vpop.f32.mrb[0].mxu0
  %1262 = vmatprep.mubr.f32.mxu0 0.0
  %1263 = vmatmul.mubr.f32.gmra.mrb[0].mxu0 %v1114
  %v1264 = vpop.f32.mrb[0].mxu0
  %v1265 = vadd.f32 %v1151, %v1264
  %v1266 = vpop.f32.mrb[0].mxu0
  %1267 = vmatprep.mubr.f32.mxu0 0.0
  %1268 = vmatmul.mubr.f32.gmra.mrb[0].mxu0 %v1115
  %v1269 = vpop.f32.mrb[0].mxu0
  %v1270 = vadd.f32 %v1151, %v1269
  %v1271 = vpop.f32.mrb[0].mxu0
  %1272 = vmatprep.mubr.f32.mxu0 0.0
  %1273 = vmatmul.mubr.f32.gmra.mrb[0].mxu0 %v1116
  %v1274 = vpop.f32.mrb[0].mxu0
  %v1275 = vadd.f32 %v1151, %v1274
  %v1276 = vpop.f32.mrb[0].mxu0
  %1277 = vmatprep.mubr.f32.mxu0 0.0
  %1278 = vmatmul.mubr.f32.gmra.mrb[0].mxu0 %v1117
  %v1279 = vpop.f32.mrb[0].mxu0
  %v1280 = vadd.f32 %v1151, %v1279
  %v1281 = vpop.f32.mrb[0].mxu0
  %1282 = vmatprep.mubr.f32.mxu0 0.0
  %1283 = vmatmul.mubr.f32.gmra.mrb[0].mxu0 %v1118
  %v1284 = vpop.f32.mrb[0].mxu0
  %v1285 = vadd.f32 %v1151, %v1284
  %v1286 = vpop.f32.mrb[0].mxu0
  %1287 = vmatprep.mubr.f32.mxu0 0.0
  %1288 = vmatmul.mubr.f32.gmra.mrb[0].mxu0 %v1119
  %v1289 = vpop.f32.mrb[0].mxu0
  %v1290 = vadd.f32 %v1151, %v1289
  %v1291 = vpop.f32.mrb[0].mxu0
  %1292 = vmatprep.mubr.f32.mxu0 0.0
  %1293 = vmatmul.mubr.f32.gmra.mrb[0].mxu0 %v1120
  %v1294 = vpop.f32.mrb[0].mxu0
  %v1295 = vadd.f32 %v1151, %v1294
  %v1296 = vpop.f32.mrb[0].mxu0
  %1297 = vmatprep.mubr.f32.mxu0 0.0
  %1298 = vmatmul.mubr.f32.gmra.mrb[0].mxu0 %v1121
  %v1299 = vpop.f32.mrb[0].mxu0
  %v1300 = vadd.f32 %v1151, %v1299
  %v1301 = vpop.f32.mrb[0].mxu0
  %1302 = vmatprep.mubr.f32.mxu0 0.0
  %1303 = vmatmul.mubr.f32.gmra.mrb[0].mxu0 %v1122
  %v1304 = vpop.f32.mrb[0].mxu0
  %v1305 = vadd.f32 %v1151, %v1304
  %v1306 = vpop.f32.mrb[0].mxu0
  %1307 = vmatprep.mubr.f32.mxu0 0.0
  %1308 = vmatmul.mubr.f32.gmra.mrb[0].mxu0 %v1123
  %v1309 = vpop.f32.mrb[0].mxu0
  %v1310 = vadd.f32 %v1151, %v1309
  %v1311 = vpop.f32.mrb[0].mxu0
  %1312 = vmatprep.mubr.f32.mxu0 0.0
  %1313 = vmatmul.mubr.f32.gmra.mrb[0].mxu0 %v1124
  %v1314 = vpop.f32.mrb[0].mxu0
  %v1315 = vadd.f32 %v1151, %v1314
  %v1316 = vpop.f32.mrb[0].mxu0
  %1317 = vmatprep.mubr.f32.mxu0 0.0
  %1318 = vmatmul.mubr.f32.gmra.mrb[0].mxu0 %v1125
  %v1319 = vpop.f32.mrb[0].mxu0
  %v1320 = vadd.f32 %v1151, %v1319
  %v1321 = vpop.f32.mrb[0].mxu0
  %1322 = vmatprep.mubr.f32.mxu0 0.0
  %1323 = vmatmul.mubr.f32.gmra.mrb[0].mxu0 %v1126
  %v1324 = vpop.f32.mrb[0].mxu0
  %v1325 = vadd.f32 %v1151, %v1324
  %v1326 = vpop.f32.mrb[0].mxu0
  %1327 = vmatprep.mubr.f32.mxu0 0.0
  %1328 = vmatmul.mubr.f32.gmra.mrb[0].mxu0 %v1127
  %v1329 = vpop.f32.mrb[0].mxu0
  %v1330 = vadd.f32 %v1151, %v1329
  %v1331 = vpop.f32.mrb[0].mxu0
  %1332 = vmatprep.mubr.f32.mxu0 0.0
  %1333 = vmatmul.mubr.f32.gmra.mrb[0].mxu0 %v1128
  %v1334 = vpop.f32.mrb[0].mxu0
  %v1335 = vadd.f32 %v1151, %v1334
  %v1336 = vpop.f32.mrb[0].mxu0
  %1337 = vmatprep.mubr.f32.mxu0 0.0
  %1338 = vmatmul.mubr.f32.gmra.mrb[0].mxu0 %v1129
  %v1339 = vpop.f32.mrb[0].mxu0
  %v1340 = vadd.f32 %v1151, %v1339
  %v1341 = vpop.f32.mrb[0].mxu0
  %1342 = vdwg.mxu0
  %v1343 = vlaneseq
  %v1344 = vand.u32 %v1343, 127
  %v1345 = vtanh.pop %v1220
  %v1346 = vtanh.pop %v1225
  %v1347 = vtanh.pop %v1230
  %v1348 = vtanh.pop %v1235
  %v1349 = vtanh.pop %v1240
  %v1350 = vtanh.pop %v1245
  %v1351 = vtanh.pop %v1250
  %v1352 = vtanh.pop %v1255
  %v1353 = vtanh.pop %v1260
  %v1354 = vtanh.pop %v1265
  %v1355 = vtanh.pop %v1270
  %v1356 = vtanh.pop %v1275
  %v1357 = vtanh.pop %v1280
  %v1358 = vtanh.pop %v1285
  %v1359 = vtanh.pop %v1290
  %v1360 = vtanh.pop %v1295
  %v1361 = vtanh.pop %v1300
  %v1362 = vtanh.pop %v1305
  %v1363 = vtanh.pop %v1310
  %v1364 = vtanh.pop %v1315
  %v1365 = vtanh.pop %v1320
  %v1366 = vtanh.pop %v1325
  %v1367 = vtanh.pop %v1330
  %v1368 = vtanh.pop %v1335
  %v1369 = vtanh.pop %v1340
  %vm1370 = vcmp.lt.s32.totalorder %v1344, 64
  %v1371 = vadd.f32 %v1345, 1.0
  %v1372 = vadd.f32 %v1346, 1.0
  %v1373 = vadd.f32 %v1347, 1.0
  %v1374 = vadd.f32 %v1348, 1.0
  %v1375 = vadd.f32 %v1349, 1.0
  %v1376 = vadd.f32 %v1350, 1.0
  %v1377 = vadd.f32 %v1351, 1.0
  %v1378 = vadd.f32 %v1352, 1.0
  %v1379 = vadd.f32 %v1353, 1.0
  %v1380 = vadd.f32 %v1354, 1.0
  %v1381 = vadd.f32 %v1355, 1.0
  %v1382 = vadd.f32 %v1356, 1.0
  %v1383 = vadd.f32 %v1357, 1.0
  %v1384 = vadd.f32 %v1358, 1.0
  %v1385 = vadd.f32 %v1359, 1.0
  %v1386 = vadd.f32 %v1360, 1.0
  %v1387 = vadd.f32 %v1361, 1.0
  %v1388 = vadd.f32 %v1362, 1.0
  %v1389 = vadd.f32 %v1363, 1.0
  %v1390 = vadd.f32 %v1364, 1.0
  %v1391 = vadd.f32 %v1365, 1.0
  %v1392 = vadd.f32 %v1366, 1.0
  %v1393 = vadd.f32 %v1367, 1.0
  %v1394 = vadd.f32 %v1368, 1.0
  %v1395 = vadd.f32 %v1369, 1.0
  %v1396 = vmul.f32 %v1371, 0.5
  %v1397 = vmul.f32 %v1372, 0.5
  %v1398 = vmul.f32 %v1373, 0.5
  %v1399 = vmul.f32 %v1374, 0.5
  %v1400 = vmul.f32 %v1375, 0.5
  %v1401 = vmul.f32 %v1376, 0.5
  %v1402 = vmul.f32 %v1377, 0.5
  %v1403 = vmul.f32 %v1378, 0.5
  %v1404 = vmul.f32 %v1379, 0.5
  %v1405 = vmul.f32 %v1380, 0.5
  %v1406 = vmul.f32 %v1381, 0.5
  %v1407 = vmul.f32 %v1382, 0.5
  %v1408 = vmul.f32 %v1383, 0.5
  %v1409 = vmul.f32 %v1384, 0.5
  %v1410 = vmul.f32 %v1385, 0.5
  %v1411 = vmul.f32 %v1386, 0.5
  %v1412 = vmul.f32 %v1387, 0.5
  %v1413 = vmul.f32 %v1388, 0.5
  %v1414 = vmul.f32 %v1389, 0.5
  %v1415 = vmul.f32 %v1390, 0.5
  %v1416 = vmul.f32 %v1391, 0.5
  %v1417 = vmul.f32 %v1392, 0.5
  %v1418 = vmul.f32 %v1393, 0.5
  %v1419 = vmul.f32 %v1394, 0.5
  %v1420 = vmul.f32 %v1395, 0.5
  %v1421 = vsel %vm1370, %v1345, %v1396
  %v1422 = vsel %vm1370, %v1346, %v1397
  %v1423 = vsel %vm1370, %v1347, %v1398
  %v1424 = vsel %vm1370, %v1348, %v1399
  %v1425 = vsel %vm1370, %v1349, %v1400
  %v1426 = vsel %vm1370, %v1350, %v1401
  %v1427 = vsel %vm1370, %v1351, %v1402
  %v1428 = vsel %vm1370, %v1352, %v1403
  %v1429 = vsel %vm1370, %v1353, %v1404
  %v1430 = vsel %vm1370, %v1354, %v1405
  %v1431 = vsel %vm1370, %v1355, %v1406
  %v1432 = vsel %vm1370, %v1356, %v1407
  %v1433 = vsel %vm1370, %v1357, %v1408
  %v1434 = vsel %vm1370, %v1358, %v1409
  %v1435 = vsel %vm1370, %v1359, %v1410
  %v1436 = vsel %vm1370, %v1360, %v1411
  %v1437 = vsel %vm1370, %v1361, %v1412
  %v1438 = vsel %vm1370, %v1362, %v1413
  %v1439 = vsel %vm1370, %v1363, %v1414
  %v1440 = vsel %vm1370, %v1364, %v1415
  %v1441 = vsel %vm1370, %v1365, %v1416
  %v1442 = vsel %vm1370, %v1366, %v1417
  %v1443 = vsel %vm1370, %v1367, %v1418
  %v1444 = vsel %vm1370, %v1368, %v1419
  %v1445 = vsel %vm1370, %v1369, %v1420
  %1446 = vst [vmem:[%s11] sm:$0xff] %v1421
  %1447 = vst [vmem:[%s11 + $0x8] sm:$0xff] %v1422
  %1448 = vst [vmem:[%s11 + $0x10] sm:$0xff] %v1423
  %1449 = vst [vmem:[%s11 + $0x18] sm:$0xff] %v1424
  %1450 = vst [vmem:[%s11 + $0x20] sm:$0xff] %v1425
  %1451 = vst [vmem:[%s11 + $0x28] sm:$0xff] %v1426
  %1452 = vst [vmem:[%s11 + $0x30] sm:$0xff] %v1427
  %1453 = vst [vmem:[%s11 + $0x38] sm:$0xff] %v1428
  %1454 = vst [vmem:[%s11 + $0x40] sm:$0xff] %v1429
  %1455 = vst [vmem:[%s11 + $0x48] sm:$0xff] %v1430
  %1456 = vst [vmem:[%s11 + $0x50] sm:$0xff] %v1431
  %1457 = vst [vmem:[%s11 + $0x58] sm:$0xff] %v1432
  %1458 = vst [vmem:[%s11 + $0x60] sm:$0xff] %v1433
  %1459 = vst [vmem:[%s11 + $0x68] sm:$0xff] %v1434
  %1460 = vst [vmem:[%s11 + $0x70] sm:$0xff] %v1435
  %1461 = vst [vmem:[%s11 + $0x78] sm:$0xff] %v1436
  %1462 = vst [vmem:[%s11 + $0x80] sm:$0xff] %v1437
  %1463 = vst [vmem:[%s11 + $0x88] sm:$0xff] %v1438
  %1464 = vst [vmem:[%s11 + $0x90] sm:$0xff] %v1439
  %1465 = vst [vmem:[%s11 + $0x98] sm:$0xff] %v1440
  %1466 = vst [vmem:[%s11 + $0xa0] sm:$0xff] %v1441
  %1467 = vst [vmem:[%s11 + $0xa8] sm:$0xff] %v1442
  %1468 = vst [vmem:[%s11 + $0xb0] sm:$0xff] %v1443
  %1469 = vst [vmem:[%s11 + $0xb8] sm:$0xff] %v1444
  %1470 = vst [vmem:[%s11 + $0xc0] sm:$0xff] %v1445
  // Predicated region
  $region46: #{entity_projection_forward.1} parent=0 // pred_check
    _
  $region47: #{entity_projection_forward.1} parent=0 // pred_check_branch
    %1472 = sbr.rel (0) target = $region49
  $region48: #{entity_projection_forward.1} parent=0 // pred_region
    _
  $region49: #{entity_projection_forward.1} parent=0 // pred_fallthru
    _
  // Predicated region
  $region50: #{entity_projection_forward.1} parent=0 // pred_check
    _
  $region51: #{entity_projection_forward.1} parent=0 // pred_check_branch
    %1474 = sbr.rel (0) target = $region53
  $region52: #{entity_projection_forward.1} parent=0 // pred_region
    _
  $region53: #{entity_projection_forward.1} parent=0 // pred_fallthru
    _

</llo_original>
